<compile_context>
chip_gen: v7x
topology: tpu7x:2x2x1
jax: 0.10.0
libtpu: 0.0.40
codegen_flags: <defaults>
</compile_context>

<pallas_src>
import jax
import jax.numpy as jnp
from jax.experimental import pallas as pl
from jax.experimental.pallas import tpu as pltpu


def mlp_kernel(x_ref, w1_ref, b1_ref, w2_ref, b2_ref, w3t_ref, b3_ref, o_ref):
    # x arrives as f32 straight from HBM (no separate wrapper-side cast pass);
    # the bf16 cast runs on the VPU, hidden under the x DMA.
    x = x_ref[...].astype(jnp.bfloat16)                              # (TM, 64)

    # fc1 + relu  (bf16 MXU matmul, f32 accumulate, f32 elementwise)
    h1 = jnp.dot(x, w1_ref[...], preferred_element_type=jnp.float32)
    h1 = jnp.maximum(h1 + b1_ref[...], 0.0)                          # (TM, 32) f32

    # fc2 + relu
    h2 = jnp.dot(h1.astype(jnp.bfloat16), w2_ref[...],
                 preferred_element_type=jnp.float32)
    h2 = jnp.maximum(h2 + b2_ref[...], 0.0)                          # (TM, 16) f32

    # fc3 as w3^T @ h2^T -> lane-dense (1, TM) row output (dense vst, not (TM,1)
    # masked 4-byte stores).
    z = jax.lax.dot_general(
        w3t_ref[...],                                                # (1, 16) bf16
        h2.astype(jnp.bfloat16),                                     # (TM, 16) bf16
        (((1,), (1,)), ((), ())),                                    # contract feature dims
        preferred_element_type=jnp.float32)                          # -> (1, TM) f32
    z = z + b3_ref[...]

    # sigmoid: exp + approx reciprocal both go to the EUP slot (VALU stays free)
    o_ref[...] = pl.reciprocal(1.0 + jnp.exp(-z), approx=True)


def simple_nn_forward(x, w1, b1, w2, b2, w3, b3, *, block_rows=2048):
    B, in_dim = x.shape
    assert in_dim == 64

    # Keep the tile a multiple of 256 (good sublane/lane alignment on v5e/v6e/v7x)
    # but don't massively overshoot small batches.  No jnp.pad: the partial last
    # block is handled by Pallas (OOB writes dropped; rows are independent).
    block_rows = max(256, min(block_rows, pl.cdiv(B, 256) * 256))
    grid = (pl.cdiv(B, block_rows),)

    # Tiny weights: pre-cast to bf16 once; they stay VMEM-resident across the grid.
    w1b = w1.astype(jnp.bfloat16)                    # (64, 32)
    w2b = w2.astype(jnp.bfloat16)                    # (32, 16)
    w3t = w3.reshape(16, 1).T.astype(jnp.bfloat16)   # (1, 16)
    b1r = b1.reshape(1, 32).astype(jnp.float32)
    b2r = b2.reshape(1, 16).astype(jnp.float32)
    b3r = b3.reshape(1, 1).astype(jnp.float32)

    out = pl.pallas_call(
        mlp_kernel,
        out_shape=jax.ShapeDtypeStruct((1, B), jnp.float32),
        grid=grid,
        in_specs=[
            pl.BlockSpec((block_rows, 64), lambda i: (i, 0)),   # x: streamed f32 tiles
            pl.BlockSpec((64, 32), lambda i: (0, 0)),           # w1: VMEM-resident
            pl.BlockSpec((1, 32), lambda i: (0, 0)),            # b1
            pl.BlockSpec((32, 16), lambda i: (0, 0)),           # w2
            pl.BlockSpec((1, 16), lambda i: (0, 0)),            # b2
            pl.BlockSpec((1, 16), lambda i: (0, 0)),            # w3^T
            pl.BlockSpec((1, 1), lambda i: (0, 0)),             # b3
        ],
        out_specs=pl.BlockSpec((1, block_rows), lambda i: (0, i)),  # lane-dense row
        compiler_params=pltpu.CompilerParams(
            dimension_semantics=("parallel",)),
        # TODO(synk): on v7x, verify the batch axis actually shards across the 2
        # TensorCores; if "parallel" is a no-op there, switch to pltpu.CORE_PARALLEL.
    )(x.astype(jnp.float32), w1b, b1r, w2b, b2r, w3t, b3r)

    # (1, B) row -> (B, 1) column (matches PyTorch output shape).
    return out.reshape(B, 1)


def init_params(key):
    # Deterministic synthetic init, same shapes as the nn.Linear layers
    # (weights stored as (in, out) = PyTorch W.T, biases 1-D).
    k1, k2, k3, k4, k5, k6 = jax.random.split(key, 6)
    w1 = jax.random.normal(k1, (64, 32), jnp.float32) * (1.0 / jnp.sqrt(64.0))
    b1 = jax.random.normal(k2, (32,), jnp.float32) * 0.01
    w2 = jax.random.normal(k3, (32, 16), jnp.float32) * (1.0 / jnp.sqrt(32.0))
    b2 = jax.random.normal(k4, (16,), jnp.float32) * 0.01
    w3 = jax.random.normal(k5, (16, 1), jnp.float32) * (1.0 / jnp.sqrt(16.0))
    b3 = jax.random.normal(k6, (1,), jnp.float32) * 0.01
    return w1, b1, w2, b2, w3, b3


def reference(x, w1, b1, w2, b2, w3, b3):
    # Pure-JAX reference mirroring the kernel's bf16-input / f32-accumulate math.
    h = jnp.maximum(
        jnp.dot(x.astype(jnp.bfloat16), w1.astype(jnp.bfloat16),
                preferred_element_type=jnp.float32) + b1.reshape(1, -1), 0.0)
    h = jnp.maximum(
        jnp.dot(h.astype(jnp.bfloat16), w2.astype(jnp.bfloat16),
                preferred_element_type=jnp.float32) + b2.reshape(1, -1), 0.0)
    z = jnp.dot(h.astype(jnp.bfloat16), w3.astype(jnp.bfloat16),
                preferred_element_type=jnp.float32) + b3.reshape(1, -1)
    return jax.nn.sigmoid(z)


if __name__ == "__main__":
    key = jax.random.PRNGKey(0)
    kx, kp = jax.random.split(key)

    B = 1000  # not a multiple of the tile -> exercises the partial-block tail path
    x = jax.random.normal(kx, (B, 64), jnp.float32)
    w1, b1, w2, b2, w3, b3 = init_params(kp)

    ref = reference(x, w1, b1, w2, b2, w3, b3)

    # Default tile (single partial block).
    out = jax.block_until_ready(simple_nn_forward(x, w1, b1, w2, b2, w3, b3))
    assert out.shape == (B, 1)
    err = float(jnp.max(jnp.abs(out - ref)))
    assert jnp.allclose(out, ref, atol=5e-3, rtol=0.0), f"max_err={err}"

    # Small tile (multi-step grid + partial last block).
    out2 = jax.block_until_ready(
        simple_nn_forward(x, w1, b1, w2, b2, w3, b3, block_rows=256))
    err2 = float(jnp.max(jnp.abs(out2 - ref)))
    assert jnp.allclose(out2, ref, atol=5e-3, rtol=0.0), f"max_err={err2}"

    print("KERNEL_OK")
</pallas_src>

<mosaic_0001>
module attributes {stable_mosaic.version = 11 : i64} {
  func.func @mlp_kernel(%arg0: i32, %arg1: memref<1024x64xf32, #tpu.memory_space<vmem>>, %arg2: memref<64x32xbf16, #tpu.memory_space<vmem>>, %arg3: memref<1x32xf32, #tpu.memory_space<vmem>>, %arg4: memref<32x16xbf16, #tpu.memory_space<vmem>>, %arg5: memref<1x16xf32, #tpu.memory_space<vmem>>, %arg6: memref<1x16xbf16, #tpu.memory_space<vmem>>, %arg7: memref<1x1xf32, #tpu.memory_space<vmem>>, %arg8: memref<1x1024xf32, #tpu.memory_space<vmem>>) attributes {dimension_semantics = [#tpu.dimension_semantics<parallel>], iteration_bounds = array<i64: 1>, scalar_prefetch = 0 : i64, scratch_operands = 0 : i64, tpu.core_type = #tpu.core_type<tc>, window_params = [{transform_indices = @transform_0, window_bounds = array<i64: 1024, 64>}, {pipeline_mode = #tpu.pipeline_mode<synchronous>, transform_indices = @transform_1, window_bounds = array<i64: 64, 32>}, {pipeline_mode = #tpu.pipeline_mode<synchronous>, transform_indices = @transform_2, window_bounds = array<i64: 1, 32>}, {pipeline_mode = #tpu.pipeline_mode<synchronous>, transform_indices = @transform_3, window_bounds = array<i64: 32, 16>}, {pipeline_mode = #tpu.pipeline_mode<synchronous>, transform_indices = @transform_4, window_bounds = array<i64: 1, 16>}, {pipeline_mode = #tpu.pipeline_mode<synchronous>, transform_indices = @transform_5, window_bounds = array<i64: 1, 16>}, {pipeline_mode = #tpu.pipeline_mode<synchronous>, transform_indices = @transform_6, window_bounds = array<i64: 1, 1>}, {transform_indices = @transform_7, window_bounds = array<i64: 1, 1024>}]} {
    %c0 = arith.constant 0 : index
    %c0_0 = arith.constant 0 : index
    %0 = vector.load %arg1[%c0, %c0_0] : memref<1024x64xf32, #tpu.memory_space<vmem>>, vector<1024x64xf32>
    %1 = arith.truncf %0 : vector<1024x64xf32> to vector<1024x64xbf16>
    %c0_1 = arith.constant 0 : index
    %c0_2 = arith.constant 0 : index
    %2 = vector.load %arg2[%c0_1, %c0_2] : memref<64x32xbf16, #tpu.memory_space<vmem>>, vector<64x32xbf16>
    %cst = arith.constant dense<0.000000e+00> : vector<1024x32xf32>
    %3 = tpu.matmul %1, %2, %cst {dimension_numbers = #tpu.dot_dimension_numbers<[1], [0], [0], [1], [0, 0, 1, 1], [], []>} : vector<1024x64xbf16>, vector<64x32xbf16>, vector<1024x32xf32> -> vector<1024x32xf32>
    %c0_3 = arith.constant 0 : index
    %c0_4 = arith.constant 0 : index
    %4 = vector.load %arg3[%c0_3, %c0_4] : memref<1x32xf32, #tpu.memory_space<vmem>>, vector<1x32xf32>
    %5 = vector.broadcast %4 : vector<1x32xf32> to vector<1024x32xf32>
    %6 = arith.addf %3, %5 : vector<1024x32xf32>
    %cst_5 = arith.constant 0.000000e+00 : f32
    %7 = vector.broadcast %cst_5 : f32 to vector<1024x32xf32>
    %8 = arith.maximumf %6, %7 : vector<1024x32xf32>
    %9 = arith.truncf %8 : vector<1024x32xf32> to vector<1024x32xbf16>
    %c0_6 = arith.constant 0 : index
    %c0_7 = arith.constant 0 : index
    %10 = vector.load %arg4[%c0_6, %c0_7] : memref<32x16xbf16, #tpu.memory_space<vmem>>, vector<32x16xbf16>
    %cst_8 = arith.constant dense<0.000000e+00> : vector<1024x16xf32>
    %11 = tpu.matmul %9, %10, %cst_8 {dimension_numbers = #tpu.dot_dimension_numbers<[1], [0], [0], [1], [0, 0, 1, 1], [], []>} : vector<1024x32xbf16>, vector<32x16xbf16>, vector<1024x16xf32> -> vector<1024x16xf32>
    %c0_9 = arith.constant 0 : index
    %c0_10 = arith.constant 0 : index
    %12 = vector.load %arg5[%c0_9, %c0_10] : memref<1x16xf32, #tpu.memory_space<vmem>>, vector<1x16xf32>
    %13 = vector.broadcast %12 : vector<1x16xf32> to vector<1024x16xf32>
    %14 = arith.addf %11, %13 : vector<1024x16xf32>
    %cst_11 = arith.constant 0.000000e+00 : f32
    %15 = vector.broadcast %cst_11 : f32 to vector<1024x16xf32>
    %16 = arith.maximumf %14, %15 : vector<1024x16xf32>
    %c0_12 = arith.constant 0 : index
    %c0_13 = arith.constant 0 : index
    %17 = vector.load %arg6[%c0_12, %c0_13] : memref<1x16xbf16, #tpu.memory_space<vmem>>, vector<1x16xbf16>
    %18 = arith.truncf %16 : vector<1024x16xf32> to vector<1024x16xbf16>
    %cst_14 = arith.constant dense<0.000000e+00> : vector<1x1024xf32>
    %19 = tpu.matmul %17, %18, %cst_14 {dimension_numbers = #tpu.dot_dimension_numbers<[1], [1], [0], [0], [0, 0, 1, 0], [], []>} : vector<1x16xbf16>, vector<1024x16xbf16>, vector<1x1024xf32> -> vector<1x1024xf32>
    %c0_15 = arith.constant 0 : index
    %c0_16 = arith.constant 0 : index
    %20 = vector.load %arg7[%c0_15, %c0_16] : memref<1x1xf32, #tpu.memory_space<vmem>>, vector<1x1xf32>
    %21 = vector.broadcast %20 : vector<1x1xf32> to vector<1x1024xf32>
    %22 = arith.addf %19, %21 : vector<1x1024xf32>
    %cst_17 = arith.constant 0.000000e+00 : f32
    %23 = vector.broadcast %cst_17 : f32 to vector<1x1024xf32>
    %24 = arith.subf %23, %22 : vector<1x1024xf32>
    %25 = math.exp %24 : vector<1x1024xf32>
    %cst_18 = arith.constant 1.000000e+00 : f32
    %26 = vector.broadcast %cst_18 : f32 to vector<1x1024xf32>
    %27 = arith.addf %26, %25 : vector<1x1024xf32>
    %28 = tpu.reciprocal %27 {approx = true} : vector<1x1024xf32> -> vector<1x1024xf32>
    %c0_19 = arith.constant 0 : index
    %c0_20 = arith.constant 0 : index
    %29 = vector.load %arg8[%c0_19, %c0_20] : memref<1x1024xf32, #tpu.memory_space<vmem>>, vector<1x1024xf32>
    tpu.vector_store %arg8[%c0_19, %c0_20], %28 {strides = array<i32>} : memref<1x1024xf32, #tpu.memory_space<vmem>>, vector<1x1024xf32>,
    return
  }
  func.func @transform_0(%arg0: i32) -> (i32, i32) {
    %c0_i32 = arith.constant 0 : i32
    %c0_i32_0 = arith.constant 0 : i32
    return %arg0, %c0_i32 : i32, i32
  }
  func.func @transform_1(%arg0: i32) -> (i32, i32) {
    %c0_i32 = arith.constant 0 : i32
    %c0_i32_0 = arith.constant 0 : i32
    %c0_i32_1 = arith.constant 0 : i32
    return %c0_i32, %c0_i32_0 : i32, i32
  }
  func.func @transform_2(%arg0: i32) -> (i32, i32) {
    %c0_i32 = arith.constant 0 : i32
    %c0_i32_0 = arith.constant 0 : i32
    %c0_i32_1 = arith.constant 0 : i32
    return %c0_i32, %c0_i32_0 : i32, i32
  }
  func.func @transform_3(%arg0: i32) -> (i32, i32) {
    %c0_i32 = arith.constant 0 : i32
    %c0_i32_0 = arith.constant 0 : i32
    %c0_i32_1 = arith.constant 0 : i32
    return %c0_i32, %c0_i32_0 : i32, i32
  }
  func.func @transform_4(%arg0: i32) -> (i32, i32) {
    %c0_i32 = arith.constant 0 : i32
    %c0_i32_0 = arith.constant 0 : i32
    %c0_i32_1 = arith.constant 0 : i32
    return %c0_i32, %c0_i32_0 : i32, i32
  }
  func.func @transform_5(%arg0: i32) -> (i32, i32) {
    %c0_i32 = arith.constant 0 : i32
    %c0_i32_0 = arith.constant 0 : i32
    %c0_i32_1 = arith.constant 0 : i32
    return %c0_i32, %c0_i32_0 : i32, i32
  }
  func.func @transform_6(%arg0: i32) -> (i32, i32) {
    %c0_i32 = arith.constant 0 : i32
    %c0_i32_0 = arith.constant 0 : i32
    %c0_i32_1 = arith.constant 0 : i32
    return %c0_i32, %c0_i32_0 : i32, i32
  }
  func.func @transform_7(%arg0: i32) -> (i32, i32) {
    %c0_i32 = arith.constant 0 : i32
    %c0_i32_0 = arith.constant 0 : i32
    return %c0_i32, %arg0 : i32, i32
  }
}

</mosaic_0001>

<llo_original>
// kernel: tpu_custom_call.1
$region0: #{tpu_custom_call.1}
  #allocation0 [shape = 'u32[]', space=smem, size = 0x4, offset = 0x4, fixed_abs, tag = 'smem constant byte address 0x4 - core index']
  #allocation1 [shape = 'u32[144,128]{1,0:T(1,128)}', space=vmem, size = 0x12000, scoped, tag = 'internal scratch']
  #allocation2 [shape = 'f32[1,1]{1,0:T(1,128)S(1)}', space=vmem, size = 0x200, scoped, tag = 'scoped memory for tpu_custom_call.1']
  %s0 = inlined_call_operand.vmem [shape: f32[1000,64], index: 0, kind: input, shape index: {}]
  %s1 = inlined_call_operand.vmem [shape: bf16[64,32], index: 1, kind: input, shape index: {}]
  %s2 = inlined_call_operand.vmem [shape: f32[1,32], index: 2, kind: input, shape index: {}]
  %s3 = inlined_call_operand.vmem [shape: bf16[32,16], index: 3, kind: input, shape index: {}]
  %s4 = inlined_call_operand.vmem [shape: f32[1,16], index: 4, kind: input, shape index: {}]
  %s5 = inlined_call_operand.vmem [shape: bf16[1,16], index: 5, kind: input, shape index: {}]
  %s6 = inlined_call_operand.<no memory space> [shape: f32[1,1], index: 6, kind: input, shape index: {}]
  %s7 = inlined_call_operand.hbm [shape: f32[1,1000], index: 7, kind: output, shape index: {}]
  %s8 = sld [smem:[#allocation0]]
  $region38: #{tpu_custom_call.1} parent=0
    _
  %s10 = ssub.s32 1, %s8
  %s11 = scalar_select 0, %s10, %s8
  %v12 = vstv %s6
  %13 = vst [vmem:[#allocation2] sm:$0x1] %v12
  $region1: #{tpu_custom_call.1} parent=0
    #allocation3 [shape = 'u8[4096]{0}', space=vmem, size = 0x1000, scoped, tag = 'output window, operand 0, single buffered']
    #allocation4 [shape = 's32[1]{0}', space=sflag, size = 0x4, scoped, tag = 'scoped memory for tpu_custom_call.1']
    %14 = vsyncpa [#allocation4], 0
    // Predicated region
    $region2: #{tpu_custom_call.1} parent=1 // pred_check
      _
    $region3: #{tpu_custom_call.1} parent=1 // pred_check_branch
      %16 = sbr.rel (0) target = $region5
    $region4: #{tpu_custom_call.1} parent=1 // pred_region
      _
    $region5: #{tpu_custom_call.1} parent=1 // pred_fallthru
      _
    // Predicated region
    $region6: #{tpu_custom_call.1} parent=1 // pred_check
      _
    $region7: #{tpu_custom_call.1} parent=1 // pred_check_branch
      %18 = sbr.rel (0) target = $region9
    $region8: #{tpu_custom_call.1} parent=1 // pred_region
      _
    $region9: #{tpu_custom_call.1} parent=1 // pred_fallthru
      _
    // Predicated region
    $region10: #{tpu_custom_call.1} parent=1 // pred_check
      _
    $region11: #{tpu_custom_call.1} parent=1 // pred_check_branch
      %20 = sbr.rel (0) target = $region13
    $region12: #{tpu_custom_call.1} parent=1 // pred_region
      _
    $region13: #{tpu_custom_call.1} parent=1 // pred_fallthru
      _
    // Predicated region
    $region14: #{tpu_custom_call.1} parent=1 // pred_check
      _
    $region15: #{tpu_custom_call.1} parent=1 // pred_check_branch
      %22 = sbr.rel (0) target = $region17
    $region16: #{tpu_custom_call.1} parent=1 // pred_region
      _
    $region17: #{tpu_custom_call.1} parent=1 // pred_fallthru
      _
    // Predicated region
    $region18: #{tpu_custom_call.1} parent=1 // pred_check
      _
    $region19: #{tpu_custom_call.1} parent=1 // pred_check_branch
      %24 = sbr.rel (0) target = $region21
    $region20: #{tpu_custom_call.1} parent=1 // pred_region
      _
    $region21: #{tpu_custom_call.1} parent=1 // pred_fallthru
      _
    // Predicated region
    $region22: #{tpu_custom_call.1} parent=1 // pred_check
      _
    $region23: #{tpu_custom_call.1} parent=1 // pred_check_branch
      %26 = sbr.rel (0) target = $region25
    $region24: #{tpu_custom_call.1} parent=1 // pred_region
      _
    $region25: #{tpu_custom_call.1} parent=1 // pred_fallthru
      _
    // Predicated region
    $region26: #{tpu_custom_call.1} parent=1 // pred_check
      _
    $region27: #{tpu_custom_call.1} parent=1 // pred_check_branch
      %28 = sbr.rel (0) target = $region29
    $region28: #{tpu_custom_call.1} parent=1 // pred_region
      _
    $region29: #{tpu_custom_call.1} parent=1 // pred_fallthru
      _
    %v30 = vld [vmem:[%s0] sm:$0xff]
    %v31 = vld [vmem:[%s0 + $0x8] sm:$0xff]
    %v32 = vld [vmem:[%s0 + $0x10] sm:$0xff]
    %v33 = vld [vmem:[%s0 + $0x18] sm:$0xff]
    %v34 = vld [vmem:[%s0 + $0x20] sm:$0xff]
    %v35 = vld [vmem:[%s0 + $0x28] sm:$0xff]
    %v36 = vld [vmem:[%s0 + $0x30] sm:$0xff]
    %v37 = vld [vmem:[%s0 + $0x38] sm:$0xff]
    %v38 = vld [vmem:[%s0 + $0x40] sm:$0xff]
    %v39 = vld [vmem:[%s0 + $0x48] sm:$0xff]
    %v40 = vld [vmem:[%s0 + $0x50] sm:$0xff]
    %v41 = vld [vmem:[%s0 + $0x58] sm:$0xff]
    %v42 = vld [vmem:[%s0 + $0x60] sm:$0xff]
    %v43 = vld [vmem:[%s0 + $0x68] sm:$0xff]
    %v44 = vld [vmem:[%s0 + $0x70] sm:$0xff]
    %v45 = vld [vmem:[%s0 + $0x78] sm:$0xff]
    %v46 = vld [vmem:[%s0 + $0x80] sm:$0xff]
    %v47 = vld [vmem:[%s0 + $0x88] sm:$0xff]
    %v48 = vld [vmem:[%s0 + $0x90] sm:$0xff]
    %v49 = vld [vmem:[%s0 + $0x98] sm:$0xff]
    %v50 = vld [vmem:[%s0 + $0xa0] sm:$0xff]
    %v51 = vld [vmem:[%s0 + $0xa8] sm:$0xff]
    %v52 = vld [vmem:[%s0 + $0xb0] sm:$0xff]
    %v53 = vld [vmem:[%s0 + $0xb8] sm:$0xff]
    %v54 = vld [vmem:[%s0 + $0xc0] sm:$0xff]
    %v55 = vld [vmem:[%s0 + $0xc8] sm:$0xff]
    %v56 = vld [vmem:[%s0 + $0xd0] sm:$0xff]
    %v57 = vld [vmem:[%s0 + $0xd8] sm:$0xff]
    %v58 = vld [vmem:[%s0 + $0xe0] sm:$0xff]
    %v59 = vld [vmem:[%s0 + $0xe8] sm:$0xff]
    %v60 = vld [vmem:[%s0 + $0xf0] sm:$0xff]
    %v61 = vld [vmem:[%s0 + $0xf8] sm:$0xff]
    %v62 = vld [vmem:[%s0 + $0x100] sm:$0xff]
    %v63 = vld [vmem:[%s0 + $0x108] sm:$0xff]
    %v64 = vld [vmem:[%s0 + $0x110] sm:$0xff]
    %v65 = vld [vmem:[%s0 + $0x118] sm:$0xff]
    %v66 = vld [vmem:[%s0 + $0x120] sm:$0xff]
    %v67 = vld [vmem:[%s0 + $0x128] sm:$0xff]
    %v68 = vld [vmem:[%s0 + $0x130] sm:$0xff]
    %v69 = vld [vmem:[%s0 + $0x138] sm:$0xff]
    %v70 = vld [vmem:[%s0 + $0x140] sm:$0xff]
    %v71 = vld [vmem:[%s0 + $0x148] sm:$0xff]
    %v72 = vld [vmem:[%s0 + $0x150] sm:$0xff]
    %v73 = vld [vmem:[%s0 + $0x158] sm:$0xff]
    %v74 = vld [vmem:[%s0 + $0x160] sm:$0xff]
    %v75 = vld [vmem:[%s0 + $0x168] sm:$0xff]
    %v76 = vld [vmem:[%s0 + $0x170] sm:$0xff]
    %v77 = vld [vmem:[%s0 + $0x178] sm:$0xff]
    %v78 = vld [vmem:[%s0 + $0x180] sm:$0xff]
    %v79 = vld [vmem:[%s0 + $0x188] sm:$0xff]
    %v80 = vld [vmem:[%s0 + $0x190] sm:$0xff]
    %v81 = vld [vmem:[%s0 + $0x198] sm:$0xff]
    %v82 = vld [vmem:[%s0 + $0x1a0] sm:$0xff]
    %v83 = vld [vmem:[%s0 + $0x1a8] sm:$0xff]
    %v84 = vld [vmem:[%s0 + $0x1b0] sm:$0xff]
    %v85 = vld [vmem:[%s0 + $0x1b8] sm:$0xff]
    %v86 = vld [vmem:[%s0 + $0x1c0] sm:$0xff]
    %v87 = vld [vmem:[%s0 + $0x1c8] sm:$0xff]
    %v88 = vld [vmem:[%s0 + $0x1d0] sm:$0xff]
    %v89 = vld [vmem:[%s0 + $0x1d8] sm:$0xff]
    %v90 = vld [vmem:[%s0 + $0x1e0] sm:$0xff]
    %v91 = vld [vmem:[%s0 + $0x1e8] sm:$0xff]
    %v92 = vld [vmem:[%s0 + $0x1f0] sm:$0xff]
    %v93 = vld [vmem:[%s0 + $0x1f8] sm:$0xff]
    %v94 = vld [vmem:[%s0 + $0x200] sm:$0xff]
    %v95 = vld [vmem:[%s0 + $0x208] sm:$0xff]
    %v96 = vld [vmem:[%s0 + $0x210] sm:$0xff]
    %v97 = vld [vmem:[%s0 + $0x218] sm:$0xff]
    %v98 = vld [vmem:[%s0 + $0x220] sm:$0xff]
    %v99 = vld [vmem:[%s0 + $0x228] sm:$0xff]
    %v100 = vld [vmem:[%s0 + $0x230] sm:$0xff]
    %v101 = vld [vmem:[%s0 + $0x238] sm:$0xff]
    %v102 = vld [vmem:[%s0 + $0x240] sm:$0xff]
    %v103 = vld [vmem:[%s0 + $0x248] sm:$0xff]
    %v104 = vld [vmem:[%s0 + $0x250] sm:$0xff]
    %v105 = vld [vmem:[%s0 + $0x258] sm:$0xff]
    %v106 = vld [vmem:[%s0 + $0x260] sm:$0xff]
    %v107 = vld [vmem:[%s0 + $0x268] sm:$0xff]
    %v108 = vld [vmem:[%s0 + $0x270] sm:$0xff]
    %v109 = vld [vmem:[%s0 + $0x278] sm:$0xff]
    %v110 = vld [vmem:[%s0 + $0x280] sm:$0xff]
    %v111 = vld [vmem:[%s0 + $0x288] sm:$0xff]
    %v112 = vld [vmem:[%s0 + $0x290] sm:$0xff]
    %v113 = vld [vmem:[%s0 + $0x298] sm:$0xff]
    %v114 = vld [vmem:[%s0 + $0x2a0] sm:$0xff]
    %v115 = vld [vmem:[%s0 + $0x2a8] sm:$0xff]
    %v116 = vld [vmem:[%s0 + $0x2b0] sm:$0xff]
    %v117 = vld [vmem:[%s0 + $0x2b8] sm:$0xff]
    %v118 = vld [vmem:[%s0 + $0x2c0] sm:$0xff]
    %v119 = vld [vmem:[%s0 + $0x2c8] sm:$0xff]
    %v120 = vld [vmem:[%s0 + $0x2d0] sm:$0xff]
    %v121 = vld [vmem:[%s0 + $0x2d8] sm:$0xff]
    %v122 = vld [vmem:[%s0 + $0x2e0] sm:$0xff]
    %v123 = vld [vmem:[%s0 + $0x2e8] sm:$0xff]
    %v124 = vld [vmem:[%s0 + $0x2f0] sm:$0xff]
    %v125 = vld [vmem:[%s0 + $0x2f8] sm:$0xff]
    %v126 = vld [vmem:[%s0 + $0x300] sm:$0xff]
    %v127 = vld [vmem:[%s0 + $0x308] sm:$0xff]
    %v128 = vld [vmem:[%s0 + $0x310] sm:$0xff]
    %v129 = vld [vmem:[%s0 + $0x318] sm:$0xff]
    %v130 = vld [vmem:[%s0 + $0x320] sm:$0xff]
    %v131 = vld [vmem:[%s0 + $0x328] sm:$0xff]
    %v132 = vld [vmem:[%s0 + $0x330] sm:$0xff]
    %v133 = vld [vmem:[%s0 + $0x338] sm:$0xff]
    %v134 = vld [vmem:[%s0 + $0x340] sm:$0xff]
    %v135 = vld [vmem:[%s0 + $0x348] sm:$0xff]
    %v136 = vld [vmem:[%s0 + $0x350] sm:$0xff]
    %v137 = vld [vmem:[%s0 + $0x358] sm:$0xff]
    %v138 = vld [vmem:[%s0 + $0x360] sm:$0xff]
    %v139 = vld [vmem:[%s0 + $0x368] sm:$0xff]
    %v140 = vld [vmem:[%s0 + $0x370] sm:$0xff]
    %v141 = vld [vmem:[%s0 + $0x378] sm:$0xff]
    %v142 = vld [vmem:[%s0 + $0x380] sm:$0xff]
    %v143 = vld [vmem:[%s0 + $0x388] sm:$0xff]
    %v144 = vld [vmem:[%s0 + $0x390] sm:$0xff]
    %v145 = vld [vmem:[%s0 + $0x398] sm:$0xff]
    %v146 = vld [vmem:[%s0 + $0x3a0] sm:$0xff]
    %v147 = vld [vmem:[%s0 + $0x3a8] sm:$0xff]
    %v148 = vld [vmem:[%s0 + $0x3b0] sm:$0xff]
    %v149 = vld [vmem:[%s0 + $0x3b8] sm:$0xff]
    %v150 = vld [vmem:[%s0 + $0x3c0] sm:$0xff]
    %v151 = vld [vmem:[%s0 + $0x3c8] sm:$0xff]
    %v152 = vld [vmem:[%s0 + $0x3d0] sm:$0xff]
    %v153 = vld [vmem:[%s0 + $0x3d8] sm:$0xff]
    %v154 = vld [vmem:[%s0 + $0x3e0] sm:$0xff]
    %v155 = vld [vmem:[%s0 + $0x3e8] sm:$0xff]
    %v156 = vld [vmem:[%s0 + $0x3f0] sm:$0xff]
    %v157 = vld [vmem:[%s0 + $0x3f8] sm:$0xff]
    %v158 = vpack.c.bf16 %v31, %v30
    %v159 = vpack.c.bf16 %v33, %v32
    %v160 = vpack.c.bf16 %v35, %v34
    %v161 = vpack.c.bf16 %v37, %v36
    %v162 = vpack.c.bf16 %v39, %v38
    %v163 = vpack.c.bf16 %v41, %v40
    %v164 = vpack.c.bf16 %v43, %v42
    %v165 = vpack.c.bf16 %v45, %v44
    %v166 = vpack.c.bf16 %v47, %v46
    %v167 = vpack.c.bf16 %v49, %v48
    %v168 = vpack.c.bf16 %v51, %v50
    %v169 = vpack.c.bf16 %v53, %v52
    %v170 = vpack.c.bf16 %v55, %v54
    %v171 = vpack.c.bf16 %v57, %v56
    %v172 = vpack.c.bf16 %v59, %v58
    %v173 = vpack.c.bf16 %v61, %v60
    %v174 = vpack.c.bf16 %v63, %v62
    %v175 = vpack.c.bf16 %v65, %v64
    %v176 = vpack.c.bf16 %v67, %v66
    %v177 = vpack.c.bf16 %v69, %v68
    %v178 = vpack.c.bf16 %v71, %v70
    %v179 = vpack.c.bf16 %v73, %v72
    %v180 = vpack.c.bf16 %v75, %v74
    %v181 = vpack.c.bf16 %v77, %v76
    %v182 = vpack.c.bf16 %v79, %v78
    %v183 = vpack.c.bf16 %v81, %v80
    %v184 = vpack.c.bf16 %v83, %v82
    %v185 = vpack.c.bf16 %v85, %v84
    %v186 = vpack.c.bf16 %v87, %v86
    %v187 = vpack.c.bf16 %v89, %v88
    %v188 = vpack.c.bf16 %v91, %v90
    %v189 = vpack.c.bf16 %v93, %v92
    %v190 = vpack.c.bf16 %v95, %v94
    %v191 = vpack.c.bf16 %v97, %v96
    %v192 = vpack.c.bf16 %v99, %v98
    %v193 = vpack.c.bf16 %v101, %v100
    %v194 = vpack.c.bf16 %v103, %v102
    %v195 = vpack.c.bf16 %v105, %v104
    %v196 = vpack.c.bf16 %v107, %v106
    %v197 = vpack.c.bf16 %v109, %v108
    %v198 = vpack.c.bf16 %v111, %v110
    %v199 = vpack.c.bf16 %v113, %v112
    %v200 = vpack.c.bf16 %v115, %v114
    %v201 = vpack.c.bf16 %v117, %v116
    %v202 = vpack.c.bf16 %v119, %v118
    %v203 = vpack.c.bf16 %v121, %v120
    %v204 = vpack.c.bf16 %v123, %v122
    %v205 = vpack.c.bf16 %v125, %v124
    %v206 = vpack.c.bf16 %v127, %v126
    %v207 = vpack.c.bf16 %v129, %v128
    %v208 = vpack.c.bf16 %v131, %v130
    %v209 = vpack.c.bf16 %v133, %v132
    %v210 = vpack.c.bf16 %v135, %v134
    %v211 = vpack.c.bf16 %v137, %v136
    %v212 = vpack.c.bf16 %v139, %v138
    %v213 = vpack.c.bf16 %v141, %v140
    %v214 = vpack.c.bf16 %v143, %v142
    %v215 = vpack.c.bf16 %v145, %v144
    %v216 = vpack.c.bf16 %v147, %v146
    %v217 = vpack.c.bf16 %v149, %v148
    %v218 = vpack.c.bf16 %v151, %v150
    %v219 = vpack.c.bf16 %v153, %v152
    %v220 = vpack.c.bf16 %v155, %v154
    %v221 = vpack.c.bf16 %v157, %v156
    %v222 = vld [vmem:[%s1] sm:$0xf]
    %v223 = vld [vmem:[%s1 + $0x4] sm:$0xf]
    %v224 = vld [vmem:[%s1 + $0x8] sm:$0xf]
    %v225 = vld [vmem:[%s1 + $0xc] sm:$0xf]
    %v226 = vld [vmem:[%s1 + $0x10] sm:$0xf]
    %v227 = vld [vmem:[%s1 + $0x14] sm:$0xf]
    %v228 = vld [vmem:[%s1 + $0x18] sm:$0xf]
    %v229 = vld [vmem:[%s1 + $0x1c] sm:$0xf]
    %v230 = vld [vmem:[%s2] sm:$0x1]
    %v232 = vlaneseq
    %v233 = vshrl.u32 %v232, 7
    %v234 = vsub.s32 0, %v233
    %v235 = vrot.slane %v230, %v234
    %v245 = vunpack.c.l.b16 %v222
    %v246 = vunpack.c.l.b16 %v223
    %v247 = vunpack.c.l.b16 %v224
    %v248 = vunpack.c.l.b16 %v225
    %v249 = vunpack.c.l.b16 %v226
    %v250 = vunpack.c.l.b16 %v227
    %v251 = vunpack.c.l.b16 %v228
    %v252 = vunpack.c.l.b16 %v229
    %v253 = vpack.c.b16 %v246, %v245
    %v254 = vpack.c.b16 %v248, %v247
    %v255 = vpack.c.b16 %v250, %v249
    %v256 = vpack.c.b16 %v252, %v251
    %vm261 = vcmask 523264
    %v263 = vsel %vm261, %v158, 0
    %v266 = vsel %vm261, %v159, 0
    %v269 = vsel %vm261, %v160, 0
    %v272 = vsel %vm261, %v161, 0
    %v275 = vsel %vm261, %v162, 0
    %v278 = vsel %vm261, %v163, 0
    %v281 = vsel %vm261, %v164, 0
    %v284 = vsel %vm261, %v165, 0
    %v287 = vsel %vm261, %v166, 0
    %v290 = vsel %vm261, %v167, 0
    %v293 = vsel %vm261, %v168, 0
    %v296 = vsel %vm261, %v169, 0
    %v299 = vsel %vm261, %v170, 0
    %v302 = vsel %vm261, %v171, 0
    %v305 = vsel %vm261, %v172, 0
    %v308 = vsel %vm261, %v173, 0
    %v311 = vsel %vm261, %v174, 0
    %v314 = vsel %vm261, %v175, 0
    %v317 = vsel %vm261, %v176, 0
    %v320 = vsel %vm261, %v177, 0
    %v323 = vsel %vm261, %v178, 0
    %v326 = vsel %vm261, %v179, 0
    %v329 = vsel %vm261, %v180, 0
    %v332 = vsel %vm261, %v181, 0
    %v335 = vsel %vm261, %v182, 0
    %v338 = vsel %vm261, %v183, 0
    %v341 = vsel %vm261, %v184, 0
    %v344 = vsel %vm261, %v185, 0
    %v347 = vsel %vm261, %v186, 0
    %v350 = vsel %vm261, %v187, 0
    %v353 = vsel %vm261, %v188, 0
    %v356 = vsel %vm261, %v189, 0
    %v359 = vsel %vm261, %v190, 0
    %v362 = vsel %vm261, %v191, 0
    %v365 = vsel %vm261, %v192, 0
    %v368 = vsel %vm261, %v193, 0
    %v371 = vsel %vm261, %v194, 0
    %v374 = vsel %vm261, %v195, 0
    %v377 = vsel %vm261, %v196, 0
    %v380 = vsel %vm261, %v197, 0
    %v383 = vsel %vm261, %v198, 0
    %v386 = vsel %vm261, %v199, 0
    %v389 = vsel %vm261, %v200, 0
    %v392 = vsel %vm261, %v201, 0
    %v395 = vsel %vm261, %v202, 0
    %v398 = vsel %vm261, %v203, 0
    %v401 = vsel %vm261, %v204, 0
    %v404 = vsel %vm261, %v205, 0
    %v407 = vsel %vm261, %v206, 0
    %v410 = vsel %vm261, %v207, 0
    %v413 = vsel %vm261, %v208, 0
    %v416 = vsel %vm261, %v209, 0
    %v419 = vsel %vm261, %v210, 0
    %v422 = vsel %vm261, %v211, 0
    %v425 = vsel %vm261, %v212, 0
    %v428 = vsel %vm261, %v213, 0
    %v431 = vsel %vm261, %v214, 0
    %v434 = vsel %vm261, %v215, 0
    %v437 = vsel %vm261, %v216, 0
    %v440 = vsel %vm261, %v217, 0
    %v443 = vsel %vm261, %v218, 0
    %v446 = vsel %vm261, %v219, 0
    %v449 = vsel %vm261, %v220, 0
    %v452 = vsel %vm261, %v221, 0
    %454 = vmatprep.subr.bf16.mxu0 0
    %455 = vmatpush1.bf16.msra.mxu0 %v253
    %456 = vmatprep.subr.bf16.mxu0 0
    %457 = vmatpush1.bf16.msra.mxu0 %v254
    %458 = vmatprep.subr.bf16.mxu0 0
    %459 = vmatpush1.bf16.msra.mxu0 %v255
    %460 = vmatprep.subr.bf16.mxu0 0
    %461 = vmatpush1.bf16.msra.mxu0 %v256
    %462 = vmatprep.subr.bf16.mxu0 0
    %463 = vmatpush1.bf16.msra.mxu0 0
    %464 = vmatprep.subr.bf16.mxu0 0
    %465 = vmatpush1.bf16.msra.mxu0 0
    %466 = vmatprep.subr.bf16.mxu0 0
    %467 = vmatpush1.bf16.msra.mxu0 0
    %468 = vmatprep.subr.bf16.mxu0 0
    %469 = vmatpush1.bf16.msra.mxu0 0
    %470 = vmatprep.subr.bf16.mxu0 0
    %471 = vmatpush1.bf16.msra.mxu0 0
    %472 = vmatprep.subr.bf16.mxu0 0
    %473 = vmatpush1.bf16.msra.mxu0 0
    %474 = vmatprep.subr.bf16.mxu0 0
    %475 = vmatpush1.bf16.msra.mxu0 0
    %476 = vmatprep.subr.bf16.mxu0 0
    %477 = vmatpush1.bf16.msra.mxu0 0
    %478 = vmatprep.subr.bf16.mxu0 0
    %479 = vmatpush1.bf16.msra.mxu0 0
    %480 = vmatprep.subr.bf16.mxu0 0
    %481 = vmatpush1.bf16.msra.mxu0 0
    %482 = vmatprep.subr.bf16.mxu0 0
    %483 = vmatpush1.bf16.msra.mxu0 0
    %484 = vmatprep.subr.bf16.mxu0 0
    %485 = vmatpush1.bf16.msra.mxu0 0
    %486 = vmatprep.mubr.bf16.mxu0 0
    %487 = vmatmul.mubr.bf16.gmra.mrb[0].mxu0 %v263
    %v488 = vpop.f32.mrb[0].mxu0
    %v489 = vadd.f32 %v235, %v488
    %v490 = vpop.f32.mrb[0].mxu0
    %v491 = vpop.f32.mrb[0].mxu0
    %v492 = vadd.f32 %v235, %v491
    %v493 = vpop.f32.mrb[0].mxu0
    %494 = vmatprep.mubr.bf16.mxu0 0
    %495 = vmatmul.mubr.bf16.gmra.mrb[0].mxu0 %v266
    %v496 = vpop.f32.mrb[0].mxu0
    %v497 = vadd.f32 %v235, %v496
    %v498 = vpop.f32.mrb[0].mxu0
    %v499 = vpop.f32.mrb[0].mxu0
    %v500 = vadd.f32 %v235, %v499
    %v501 = vpop.f32.mrb[0].mxu0
    %502 = vmatprep.mubr.bf16.mxu0 0
    %503 = vmatmul.mubr.bf16.gmra.mrb[0].mxu0 %v269
    %v504 = vpop.f32.mrb[0].mxu0
    %v505 = vadd.f32 %v235, %v504
    %v506 = vpop.f32.mrb[0].mxu0
    %v507 = vpop.f32.mrb[0].mxu0
    %v508 = vadd.f32 %v235, %v507
    %v509 = vpop.f32.mrb[0].mxu0
    %510 = vmatprep.mubr.bf16.mxu0 0
    %511 = vmatmul.mubr.bf16.gmra.mrb[0].mxu0 %v272
    %v512 = vpop.f32.mrb[0].mxu0
    %v513 = vadd.f32 %v235, %v512
    %v514 = vpop.f32.mrb[0].mxu0
    %v515 = vpop.f32.mrb[0].mxu0
    %v516 = vadd.f32 %v235, %v515
    %v517 = vpop.f32.mrb[0].mxu0
    %518 = vmatprep.mubr.bf16.mxu0 0
    %519 = vmatmul.mubr.bf16.gmra.mrb[0].mxu0 %v275
    %v520 = vpop.f32.mrb[0].mxu0
    %v521 = vadd.f32 %v235, %v520
    %v522 = vpop.f32.mrb[0].mxu0
    %v523 = vpop.f32.mrb[0].mxu0
    %v524 = vadd.f32 %v235, %v523
    %v525 = vpop.f32.mrb[0].mxu0
    %526 = vmatprep.mubr.bf16.mxu0 0
    %527 = vmatmul.mubr.bf16.gmra.mrb[0].mxu0 %v278
    %v528 = vpop.f32.mrb[0].mxu0
    %v529 = vadd.f32 %v235, %v528
    %v530 = vpop.f32.mrb[0].mxu0
    %v531 = vpop.f32.mrb[0].mxu0
    %v532 = vadd.f32 %v235, %v531
    %v533 = vpop.f32.mrb[0].mxu0
    %534 = vmatprep.mubr.bf16.mxu0 0
    %535 = vmatmul.mubr.bf16.gmra.mrb[0].mxu0 %v281
    %v536 = vpop.f32.mrb[0].mxu0
    %v537 = vadd.f32 %v235, %v536
    %v538 = vpop.f32.mrb[0].mxu0
    %v539 = vpop.f32.mrb[0].mxu0
    %v540 = vadd.f32 %v235, %v539
    %v541 = vpop.f32.mrb[0].mxu0
    %542 = vmatprep.mubr.bf16.mxu0 0
    %543 = vmatmul.mubr.bf16.gmra.mrb[0].mxu0 %v284
    %v544 = vpop.f32.mrb[0].mxu0
    %v545 = vadd.f32 %v235, %v544
    %v546 = vpop.f32.mrb[0].mxu0
    %v547 = vpop.f32.mrb[0].mxu0
    %v548 = vadd.f32 %v235, %v547
    %v549 = vpop.f32.mrb[0].mxu0
    %550 = vmatprep.mubr.bf16.mxu0 0
    %551 = vmatmul.mubr.bf16.gmra.mrb[0].mxu0 %v287
    %v552 = vpop.f32.mrb[0].mxu0
    %v553 = vadd.f32 %v235, %v552
    %v554 = vpop.f32.mrb[0].mxu0
    %v555 = vpop.f32.mrb[0].mxu0
    %v556 = vadd.f32 %v235, %v555
    %v557 = vpop.f32.mrb[0].mxu0
    %558 = vmatprep.mubr.bf16.mxu0 0
    %559 = vmatmul.mubr.bf16.gmra.mrb[0].mxu0 %v290
    %v560 = vpop.f32.mrb[0].mxu0
    %v561 = vadd.f32 %v235, %v560
    %v562 = vpop.f32.mrb[0].mxu0
    %v563 = vpop.f32.mrb[0].mxu0
    %v564 = vadd.f32 %v235, %v563
    %v565 = vpop.f32.mrb[0].mxu0
    %566 = vmatprep.mubr.bf16.mxu0 0
    %567 = vmatmul.mubr.bf16.gmra.mrb[0].mxu0 %v293
    %v568 = vpop.f32.mrb[0].mxu0
    %v569 = vadd.f32 %v235, %v568
    %v570 = vpop.f32.mrb[0].mxu0
    %v571 = vpop.f32.mrb[0].mxu0
    %v572 = vadd.f32 %v235, %v571
    %v573 = vpop.f32.mrb[0].mxu0
    %574 = vmatprep.mubr.bf16.mxu0 0
    %575 = vmatmul.mubr.bf16.gmra.mrb[0].mxu0 %v296
    %v576 = vpop.f32.mrb[0].mxu0
    %v577 = vadd.f32 %v235, %v576
    %v578 = vpop.f32.mrb[0].mxu0
    %v579 = vpop.f32.mrb[0].mxu0
    %v580 = vadd.f32 %v235, %v579
    %v581 = vpop.f32.mrb[0].mxu0
    %582 = vmatprep.mubr.bf16.mxu0 0
    %583 = vmatmul.mubr.bf16.gmra.mrb[0].mxu0 %v299
    %v584 = vpop.f32.mrb[0].mxu0
    %v585 = vadd.f32 %v235, %v584
    %v586 = vpop.f32.mrb[0].mxu0
    %v587 = vpop.f32.mrb[0].mxu0
    %v588 = vadd.f32 %v235, %v587
    %v589 = vpop.f32.mrb[0].mxu0
    %590 = vmatprep.mubr.bf16.mxu0 0
    %591 = vmatmul.mubr.bf16.gmra.mrb[0].mxu0 %v302
    %v592 = vpop.f32.mrb[0].mxu0
    %v593 = vadd.f32 %v235, %v592
    %v594 = vpop.f32.mrb[0].mxu0
    %v595 = vpop.f32.mrb[0].mxu0
    %v596 = vadd.f32 %v235, %v595
    %v597 = vpop.f32.mrb[0].mxu0
    %598 = vmatprep.mubr.bf16.mxu0 0
    %599 = vmatmul.mubr.bf16.gmra.mrb[0].mxu0 %v305
    %v600 = vpop.f32.mrb[0].mxu0
    %v601 = vadd.f32 %v235, %v600
    %v602 = vpop.f32.mrb[0].mxu0
    %v603 = vpop.f32.mrb[0].mxu0
    %v604 = vadd.f32 %v235, %v603
    %v605 = vpop.f32.mrb[0].mxu0
    %606 = vmatprep.mubr.bf16.mxu0 0
    %607 = vmatmul.mubr.bf16.gmra.mrb[0].mxu0 %v308
    %v608 = vpop.f32.mrb[0].mxu0
    %v609 = vadd.f32 %v235, %v608
    %v610 = vpop.f32.mrb[0].mxu0
    %v611 = vpop.f32.mrb[0].mxu0
    %v612 = vadd.f32 %v235, %v611
    %v613 = vpop.f32.mrb[0].mxu0
    %614 = vmatprep.mubr.bf16.mxu0 0
    %615 = vmatmul.mubr.bf16.gmra.mrb[0].mxu0 %v311
    %v616 = vpop.f32.mrb[0].mxu0
    %v617 = vadd.f32 %v235, %v616
    %v618 = vpop.f32.mrb[0].mxu0
    %v619 = vpop.f32.mrb[0].mxu0
    %v620 = vadd.f32 %v235, %v619
    %v621 = vpop.f32.mrb[0].mxu0
    %622 = vmatprep.mubr.bf16.mxu0 0
    %623 = vmatmul.mubr.bf16.gmra.mrb[0].mxu0 %v314
    %v624 = vpop.f32.mrb[0].mxu0
    %v625 = vadd.f32 %v235, %v624
    %v626 = vpop.f32.mrb[0].mxu0
    %v627 = vpop.f32.mrb[0].mxu0
    %v628 = vadd.f32 %v235, %v627
    %v629 = vpop.f32.mrb[0].mxu0
    %630 = vmatprep.mubr.bf16.mxu0 0
    %631 = vmatmul.mubr.bf16.gmra.mrb[0].mxu0 %v317
    %v632 = vpop.f32.mrb[0].mxu0
    %v633 = vadd.f32 %v235, %v632
    %v634 = vpop.f32.mrb[0].mxu0
    %v635 = vpop.f32.mrb[0].mxu0
    %v636 = vadd.f32 %v235, %v635
    %v637 = vpop.f32.mrb[0].mxu0
    %638 = vmatprep.mubr.bf16.mxu0 0
    %639 = vmatmul.mubr.bf16.gmra.mrb[0].mxu0 %v320
    %v640 = vpop.f32.mrb[0].mxu0
    %v641 = vadd.f32 %v235, %v640
    %v642 = vpop.f32.mrb[0].mxu0
    %v643 = vpop.f32.mrb[0].mxu0
    %v644 = vadd.f32 %v235, %v643
    %v645 = vpop.f32.mrb[0].mxu0
    %646 = vmatprep.mubr.bf16.mxu0 0
    %647 = vmatmul.mubr.bf16.gmra.mrb[0].mxu0 %v323
    %v648 = vpop.f32.mrb[0].mxu0
    %v649 = vadd.f32 %v235, %v648
    %v650 = vpop.f32.mrb[0].mxu0
    %v651 = vpop.f32.mrb[0].mxu0
    %v652 = vadd.f32 %v235, %v651
    %v653 = vpop.f32.mrb[0].mxu0
    %654 = vmatprep.mubr.bf16.mxu0 0
    %655 = vmatmul.mubr.bf16.gmra.mrb[0].mxu0 %v326
    %v656 = vpop.f32.mrb[0].mxu0
    %v657 = vadd.f32 %v235, %v656
    %v658 = vpop.f32.mrb[0].mxu0
    %v659 = vpop.f32.mrb[0].mxu0
    %v660 = vadd.f32 %v235, %v659
    %v661 = vpop.f32.mrb[0].mxu0
    %662 = vmatprep.mubr.bf16.mxu0 0
    %663 = vmatmul.mubr.bf16.gmra.mrb[0].mxu0 %v329
    %v664 = vpop.f32.mrb[0].mxu0
    %v665 = vadd.f32 %v235, %v664
    %v666 = vpop.f32.mrb[0].mxu0
    %v667 = vpop.f32.mrb[0].mxu0
    %v668 = vadd.f32 %v235, %v667
    %v669 = vpop.f32.mrb[0].mxu0
    %670 = vmatprep.mubr.bf16.mxu0 0
    %671 = vmatmul.mubr.bf16.gmra.mrb[0].mxu0 %v332
    %v672 = vpop.f32.mrb[0].mxu0
    %v673 = vadd.f32 %v235, %v672
    %v674 = vpop.f32.mrb[0].mxu0
    %v675 = vpop.f32.mrb[0].mxu0
    %v676 = vadd.f32 %v235, %v675
    %v677 = vpop.f32.mrb[0].mxu0
    %678 = vmatprep.mubr.bf16.mxu0 0
    %679 = vmatmul.mubr.bf16.gmra.mrb[0].mxu0 %v335
    %v680 = vpop.f32.mrb[0].mxu0
    %v681 = vadd.f32 %v235, %v680
    %v682 = vpop.f32.mrb[0].mxu0
    %v683 = vpop.f32.mrb[0].mxu0
    %v684 = vadd.f32 %v235, %v683
    %v685 = vpop.f32.mrb[0].mxu0
    %686 = vmatprep.mubr.bf16.mxu0 0
    %687 = vmatmul.mubr.bf16.gmra.mrb[0].mxu0 %v338
    %v688 = vpop.f32.mrb[0].mxu0
    %v689 = vadd.f32 %v235, %v688
    %v690 = vpop.f32.mrb[0].mxu0
    %v691 = vpop.f32.mrb[0].mxu0
    %v692 = vadd.f32 %v235, %v691
    %v693 = vpop.f32.mrb[0].mxu0
    %694 = vmatprep.mubr.bf16.mxu0 0
    %695 = vmatmul.mubr.bf16.gmra.mrb[0].mxu0 %v341
    %v696 = vpop.f32.mrb[0].mxu0
    %v697 = vadd.f32 %v235, %v696
    %v698 = vpop.f32.mrb[0].mxu0
    %v699 = vpop.f32.mrb[0].mxu0
    %v700 = vadd.f32 %v235, %v699
    %v701 = vpop.f32.mrb[0].mxu0
    %702 = vmatprep.mubr.bf16.mxu0 0
    %703 = vmatmul.mubr.bf16.gmra.mrb[0].mxu0 %v344
    %v704 = vpop.f32.mrb[0].mxu0
    %v705 = vadd.f32 %v235, %v704
    %v706 = vpop.f32.mrb[0].mxu0
    %v707 = vpop.f32.mrb[0].mxu0
    %v708 = vadd.f32 %v235, %v707
    %v709 = vpop.f32.mrb[0].mxu0
    %710 = vmatprep.mubr.bf16.mxu0 0
    %711 = vmatmul.mubr.bf16.gmra.mrb[0].mxu0 %v347
    %v712 = vpop.f32.mrb[0].mxu0
    %v713 = vadd.f32 %v235, %v712
    %v714 = vpop.f32.mrb[0].mxu0
    %v715 = vpop.f32.mrb[0].mxu0
    %v716 = vadd.f32 %v235, %v715
    %v717 = vpop.f32.mrb[0].mxu0
    %718 = vmatprep.mubr.bf16.mxu0 0
    %719 = vmatmul.mubr.bf16.gmra.mrb[0].mxu0 %v350
    %v720 = vpop.f32.mrb[0].mxu0
    %v721 = vadd.f32 %v235, %v720
    %v722 = vpop.f32.mrb[0].mxu0
    %v723 = vpop.f32.mrb[0].mxu0
    %v724 = vadd.f32 %v235, %v723
    %v725 = vpop.f32.mrb[0].mxu0
    %726 = vmatprep.mubr.bf16.mxu0 0
    %727 = vmatmul.mubr.bf16.gmra.mrb[0].mxu0 %v353
    %v728 = vpop.f32.mrb[0].mxu0
    %v729 = vadd.f32 %v235, %v728
    %v730 = vpop.f32.mrb[0].mxu0
    %v731 = vpop.f32.mrb[0].mxu0
    %v732 = vadd.f32 %v235, %v731
    %v733 = vpop.f32.mrb[0].mxu0
    %734 = vmatprep.mubr.bf16.mxu0 0
    %735 = vmatmul.mubr.bf16.gmra.mrb[0].mxu0 %v356
    %v736 = vpop.f32.mrb[0].mxu0
    %v737 = vadd.f32 %v235, %v736
    %v738 = vpop.f32.mrb[0].mxu0
    %v739 = vpop.f32.mrb[0].mxu0
    %v740 = vadd.f32 %v235, %v739
    %v741 = vpop.f32.mrb[0].mxu0
    %742 = vmatprep.mubr.bf16.mxu0 0
    %743 = vmatmul.mubr.bf16.gmra.mrb[0].mxu0 %v359
    %v744 = vpop.f32.mrb[0].mxu0
    %v745 = vadd.f32 %v235, %v744
    %v746 = vpop.f32.mrb[0].mxu0
    %v747 = vpop.f32.mrb[0].mxu0
    %v748 = vadd.f32 %v235, %v747
    %v749 = vpop.f32.mrb[0].mxu0
    %750 = vmatprep.mubr.bf16.mxu0 0
    %751 = vmatmul.mubr.bf16.gmra.mrb[0].mxu0 %v362
    %v752 = vpop.f32.mrb[0].mxu0
    %v753 = vadd.f32 %v235, %v752
    %v754 = vpop.f32.mrb[0].mxu0
    %v755 = vpop.f32.mrb[0].mxu0
    %v756 = vadd.f32 %v235, %v755
    %v757 = vpop.f32.mrb[0].mxu0
    %758 = vmatprep.mubr.bf16.mxu0 0
    %759 = vmatmul.mubr.bf16.gmra.mrb[0].mxu0 %v365
    %v760 = vpop.f32.mrb[0].mxu0
    %v761 = vadd.f32 %v235, %v760
    %v762 = vpop.f32.mrb[0].mxu0
    %v763 = vpop.f32.mrb[0].mxu0
    %v764 = vadd.f32 %v235, %v763
    %v765 = vpop.f32.mrb[0].mxu0
    %766 = vmatprep.mubr.bf16.mxu0 0
    %767 = vmatmul.mubr.bf16.gmra.mrb[0].mxu0 %v368
    %v768 = vpop.f32.mrb[0].mxu0
    %v769 = vadd.f32 %v235, %v768
    %v770 = vpop.f32.mrb[0].mxu0
    %v771 = vpop.f32.mrb[0].mxu0
    %v772 = vadd.f32 %v235, %v771
    %v773 = vpop.f32.mrb[0].mxu0
    %774 = vmatprep.mubr.bf16.mxu0 0
    %775 = vmatmul.mubr.bf16.gmra.mrb[0].mxu0 %v371
    %v776 = vpop.f32.mrb[0].mxu0
    %v777 = vadd.f32 %v235, %v776
    %v778 = vpop.f32.mrb[0].mxu0
    %v779 = vpop.f32.mrb[0].mxu0
    %v780 = vadd.f32 %v235, %v779
    %v781 = vpop.f32.mrb[0].mxu0
    %782 = vmatprep.mubr.bf16.mxu0 0
    %783 = vmatmul.mubr.bf16.gmra.mrb[0].mxu0 %v374
    %v784 = vpop.f32.mrb[0].mxu0
    %v785 = vadd.f32 %v235, %v784
    %v786 = vpop.f32.mrb[0].mxu0
    %v787 = vpop.f32.mrb[0].mxu0
    %v788 = vadd.f32 %v235, %v787
    %v789 = vpop.f32.mrb[0].mxu0
    %790 = vmatprep.mubr.bf16.mxu0 0
    %791 = vmatmul.mubr.bf16.gmra.mrb[0].mxu0 %v377
    %v792 = vpop.f32.mrb[0].mxu0
    %v793 = vadd.f32 %v235, %v792
    %v794 = vpop.f32.mrb[0].mxu0
    %v795 = vpop.f32.mrb[0].mxu0
    %v796 = vadd.f32 %v235, %v795
    %v797 = vpop.f32.mrb[0].mxu0
    %798 = vmatprep.mubr.bf16.mxu0 0
    %799 = vmatmul.mubr.bf16.gmra.mrb[0].mxu0 %v380
    %v800 = vpop.f32.mrb[0].mxu0
    %v801 = vadd.f32 %v235, %v800
    %v802 = vpop.f32.mrb[0].mxu0
    %v803 = vpop.f32.mrb[0].mxu0
    %v804 = vadd.f32 %v235, %v803
    %v805 = vpop.f32.mrb[0].mxu0
    %806 = vmatprep.mubr.bf16.mxu0 0
    %807 = vmatmul.mubr.bf16.gmra.mrb[0].mxu0 %v383
    %v808 = vpop.f32.mrb[0].mxu0
    %v809 = vadd.f32 %v235, %v808
    %v810 = vpop.f32.mrb[0].mxu0
    %v811 = vpop.f32.mrb[0].mxu0
    %v812 = vadd.f32 %v235, %v811
    %v813 = vpop.f32.mrb[0].mxu0
    %814 = vmatprep.mubr.bf16.mxu0 0
    %815 = vmatmul.mubr.bf16.gmra.mrb[0].mxu0 %v386
    %v816 = vpop.f32.mrb[0].mxu0
    %v817 = vadd.f32 %v235, %v816
    %v818 = vpop.f32.mrb[0].mxu0
    %v819 = vpop.f32.mrb[0].mxu0
    %v820 = vadd.f32 %v235, %v819
    %v821 = vpop.f32.mrb[0].mxu0
    %822 = vmatprep.mubr.bf16.mxu0 0
    %823 = vmatmul.mubr.bf16.gmra.mrb[0].mxu0 %v389
    %v824 = vpop.f32.mrb[0].mxu0
    %v825 = vadd.f32 %v235, %v824
    %v826 = vpop.f32.mrb[0].mxu0
    %v827 = vpop.f32.mrb[0].mxu0
    %v828 = vadd.f32 %v235, %v827
    %v829 = vpop.f32.mrb[0].mxu0
    %830 = vmatprep.mubr.bf16.mxu0 0
    %831 = vmatmul.mubr.bf16.gmra.mrb[0].mxu0 %v392
    %v832 = vpop.f32.mrb[0].mxu0
    %v833 = vadd.f32 %v235, %v832
    %v834 = vpop.f32.mrb[0].mxu0
    %v835 = vpop.f32.mrb[0].mxu0
    %v836 = vadd.f32 %v235, %v835
    %v837 = vpop.f32.mrb[0].mxu0
    %838 = vmatprep.mubr.bf16.mxu0 0
    %839 = vmatmul.mubr.bf16.gmra.mrb[0].mxu0 %v395
    %v840 = vpop.f32.mrb[0].mxu0
    %v841 = vadd.f32 %v235, %v840
    %v842 = vpop.f32.mrb[0].mxu0
    %v843 = vpop.f32.mrb[0].mxu0
    %v844 = vadd.f32 %v235, %v843
    %v845 = vpop.f32.mrb[0].mxu0
    %846 = vmatprep.mubr.bf16.mxu0 0
    %847 = vmatmul.mubr.bf16.gmra.mrb[0].mxu0 %v398
    %v848 = vpop.f32.mrb[0].mxu0
    %v849 = vadd.f32 %v235, %v848
    %v850 = vpop.f32.mrb[0].mxu0
    %v851 = vpop.f32.mrb[0].mxu0
    %v852 = vadd.f32 %v235, %v851
    %v853 = vpop.f32.mrb[0].mxu0
    %854 = vmatprep.mubr.bf16.mxu0 0
    %855 = vmatmul.mubr.bf16.gmra.mrb[0].mxu0 %v401
    %v856 = vpop.f32.mrb[0].mxu0
    %v857 = vadd.f32 %v235, %v856
    %v858 = vpop.f32.mrb[0].mxu0
    %v859 = vpop.f32.mrb[0].mxu0
    %v860 = vadd.f32 %v235, %v859
    %v861 = vpop.f32.mrb[0].mxu0
    %862 = vmatprep.mubr.bf16.mxu0 0
    %863 = vmatmul.mubr.bf16.gmra.mrb[0].mxu0 %v404
    %v864 = vpop.f32.mrb[0].mxu0
    %v865 = vadd.f32 %v235, %v864
    %v866 = vpop.f32.mrb[0].mxu0
    %v867 = vpop.f32.mrb[0].mxu0
    %v868 = vadd.f32 %v235, %v867
    %v869 = vpop.f32.mrb[0].mxu0
    %870 = vmatprep.mubr.bf16.mxu0 0
    %871 = vmatmul.mubr.bf16.gmra.mrb[0].mxu0 %v407
    %v872 = vpop.f32.mrb[0].mxu0
    %v873 = vadd.f32 %v235, %v872
    %v874 = vpop.f32.mrb[0].mxu0
    %v875 = vpop.f32.mrb[0].mxu0
    %v876 = vadd.f32 %v235, %v875
    %v877 = vpop.f32.mrb[0].mxu0
    %878 = vmatprep.mubr.bf16.mxu0 0
    %879 = vmatmul.mubr.bf16.gmra.mrb[0].mxu0 %v410
    %v880 = vpop.f32.mrb[0].mxu0
    %v881 = vadd.f32 %v235, %v880
    %v882 = vpop.f32.mrb[0].mxu0
    %v883 = vpop.f32.mrb[0].mxu0
    %v884 = vadd.f32 %v235, %v883
    %v885 = vpop.f32.mrb[0].mxu0
    %886 = vmatprep.mubr.bf16.mxu0 0
    %887 = vmatmul.mubr.bf16.gmra.mrb[0].mxu0 %v413
    %v888 = vpop.f32.mrb[0].mxu0
    %v889 = vadd.f32 %v235, %v888
    %v890 = vpop.f32.mrb[0].mxu0
    %v891 = vpop.f32.mrb[0].mxu0
    %v892 = vadd.f32 %v235, %v891
    %v893 = vpop.f32.mrb[0].mxu0
    %894 = vmatprep.mubr.bf16.mxu0 0
    %895 = vmatmul.mubr.bf16.gmra.mrb[0].mxu0 %v416
    %v896 = vpop.f32.mrb[0].mxu0
    %v897 = vadd.f32 %v235, %v896
    %v898 = vpop.f32.mrb[0].mxu0
    %v899 = vpop.f32.mrb[0].mxu0
    %v900 = vadd.f32 %v235, %v899
    %v901 = vpop.f32.mrb[0].mxu0
    %902 = vmatprep.mubr.bf16.mxu0 0
    %903 = vmatmul.mubr.bf16.gmra.mrb[0].mxu0 %v419
    %v904 = vpop.f32.mrb[0].mxu0
    %v905 = vadd.f32 %v235, %v904
    %v906 = vpop.f32.mrb[0].mxu0
    %v907 = vpop.f32.mrb[0].mxu0
    %v908 = vadd.f32 %v235, %v907
    %v909 = vpop.f32.mrb[0].mxu0
    %910 = vmatprep.mubr.bf16.mxu0 0
    %911 = vmatmul.mubr.bf16.gmra.mrb[0].mxu0 %v422
    %v912 = vpop.f32.mrb[0].mxu0
    %v913 = vadd.f32 %v235, %v912
    %v914 = vpop.f32.mrb[0].mxu0
    %v915 = vpop.f32.mrb[0].mxu0
    %v916 = vadd.f32 %v235, %v915
    %v917 = vpop.f32.mrb[0].mxu0
    %918 = vmatprep.mubr.bf16.mxu0 0
    %919 = vmatmul.mubr.bf16.gmra.mrb[0].mxu0 %v425
    %v920 = vpop.f32.mrb[0].mxu0
    %v921 = vadd.f32 %v235, %v920
    %v922 = vpop.f32.mrb[0].mxu0
    %v923 = vpop.f32.mrb[0].mxu0
    %v924 = vadd.f32 %v235, %v923
    %v925 = vpop.f32.mrb[0].mxu0
    %926 = vmatprep.mubr.bf16.mxu0 0
    %927 = vmatmul.mubr.bf16.gmra.mrb[0].mxu0 %v428
    %v928 = vpop.f32.mrb[0].mxu0
    %v929 = vadd.f32 %v235, %v928
    %v930 = vpop.f32.mrb[0].mxu0
    %v931 = vpop.f32.mrb[0].mxu0
    %v932 = vadd.f32 %v235, %v931
    %v933 = vpop.f32.mrb[0].mxu0
    %934 = vmatprep.mubr.bf16.mxu0 0
    %935 = vmatmul.mubr.bf16.gmra.mrb[0].mxu0 %v431
    %v936 = vpop.f32.mrb[0].mxu0
    %v937 = vadd.f32 %v235, %v936
    %v938 = vpop.f32.mrb[0].mxu0
    %v939 = vpop.f32.mrb[0].mxu0
    %v940 = vadd.f32 %v235, %v939
    %v941 = vpop.f32.mrb[0].mxu0
    %942 = vmatprep.mubr.bf16.mxu0 0
    %943 = vmatmul.mubr.bf16.gmra.mrb[0].mxu0 %v434
    %v944 = vpop.f32.mrb[0].mxu0
    %v945 = vadd.f32 %v235, %v944
    %v946 = vpop.f32.mrb[0].mxu0
    %v947 = vpop.f32.mrb[0].mxu0
    %v948 = vadd.f32 %v235, %v947
    %v949 = vpop.f32.mrb[0].mxu0
    %950 = vmatprep.mubr.bf16.mxu0 0
    %951 = vmatmul.mubr.bf16.gmra.mrb[0].mxu0 %v437
    %v952 = vpop.f32.mrb[0].mxu0
    %v953 = vadd.f32 %v235, %v952
    %v954 = vpop.f32.mrb[0].mxu0
    %v955 = vpop.f32.mrb[0].mxu0
    %v956 = vadd.f32 %v235, %v955
    %v957 = vpop.f32.mrb[0].mxu0
    %958 = vmatprep.mubr.bf16.mxu0 0
    %959 = vmatmul.mubr.bf16.gmra.mrb[0].mxu0 %v440
    %v960 = vpop.f32.mrb[0].mxu0
    %v961 = vadd.f32 %v235, %v960
    %v962 = vpop.f32.mrb[0].mxu0
    %v963 = vpop.f32.mrb[0].mxu0
    %v964 = vadd.f32 %v235, %v963
    %v965 = vpop.f32.mrb[0].mxu0
    %966 = vmatprep.mubr.bf16.mxu0 0
    %967 = vmatmul.mubr.bf16.gmra.mrb[0].mxu0 %v443
    %v968 = vpop.f32.mrb[0].mxu0
    %v969 = vadd.f32 %v235, %v968
    %v970 = vpop.f32.mrb[0].mxu0
    %v971 = vpop.f32.mrb[0].mxu0
    %v972 = vadd.f32 %v235, %v971
    %v973 = vpop.f32.mrb[0].mxu0
    %974 = vmatprep.mubr.bf16.mxu0 0
    %975 = vmatmul.mubr.bf16.gmra.mrb[0].mxu0 %v446
    %v976 = vpop.f32.mrb[0].mxu0
    %v977 = vadd.f32 %v235, %v976
    %v978 = vpop.f32.mrb[0].mxu0
    %v979 = vpop.f32.mrb[0].mxu0
    %v980 = vadd.f32 %v235, %v979
    %v981 = vpop.f32.mrb[0].mxu0
    %982 = vmatprep.mubr.bf16.mxu0 0
    %983 = vmatmul.mubr.bf16.gmra.mrb[0].mxu0 %v449
    %v984 = vpop.f32.mrb[0].mxu0
    %v985 = vadd.f32 %v235, %v984
    %v986 = vpop.f32.mrb[0].mxu0
    %v987 = vpop.f32.mrb[0].mxu0
    %v988 = vadd.f32 %v235, %v987
    %v989 = vpop.f32.mrb[0].mxu0
    %990 = vmatprep.mubr.bf16.mxu0 0
    %991 = vmatmul.mubr.bf16.gmra.mrb[0].mxu0 %v452
    %v992 = vpop.f32.mrb[0].mxu0
    %v993 = vadd.f32 %v235, %v992
    %v994 = vpop.f32.mrb[0].mxu0
    %v995 = vpop.f32.mrb[0].mxu0
    %v996 = vadd.f32 %v235, %v995
    %v997 = vpop.f32.mrb[0].mxu0
    %998 = vdwg.mxu0
    %v999 = vmax.f32 %v489, 0.0
    %v1000 = vmax.f32 %v492, 0.0
    %v1001 = vmax.f32 %v497, 0.0
    %v1002 = vmax.f32 %v500, 0.0
    %v1003 = vmax.f32 %v505, 0.0
    %v1004 = vmax.f32 %v508, 0.0
    %v1005 = vmax.f32 %v513, 0.0
    %v1006 = vmax.f32 %v516, 0.0
    %v1007 = vmax.f32 %v521, 0.0
    %v1008 = vmax.f32 %v524, 0.0
    %v1009 = vmax.f32 %v529, 0.0
    %v1010 = vmax.f32 %v532, 0.0
    %v1011 = vmax.f32 %v537, 0.0
    %v1012 = vmax.f32 %v540, 0.0
    %v1013 = vmax.f32 %v545, 0.0
    %v1014 = vmax.f32 %v548, 0.0
    %v1015 = vmax.f32 %v553, 0.0
    %v1016 = vmax.f32 %v556, 0.0
    %v1017 = vmax.f32 %v561, 0.0
    %v1018 = vmax.f32 %v564, 0.0
    %v1019 = vmax.f32 %v569, 0.0
    %v1020 = vmax.f32 %v572, 0.0
    %v1021 = vmax.f32 %v577, 0.0
    %v1022 = vmax.f32 %v580, 0.0
    %v1023 = vmax.f32 %v585, 0.0
    %v1024 = vmax.f32 %v588, 0.0
    %v1025 = vmax.f32 %v593, 0.0
    %v1026 = vmax.f32 %v596, 0.0
    %v1027 = vmax.f32 %v601, 0.0
    %v1028 = vmax.f32 %v604, 0.0
    %v1029 = vmax.f32 %v609, 0.0
    %v1030 = vmax.f32 %v612, 0.0
    %v1031 = vmax.f32 %v617, 0.0
    %v1032 = vmax.f32 %v620, 0.0
    %v1033 = vmax.f32 %v625, 0.0
    %v1034 = vmax.f32 %v628, 0.0
    %v1035 = vmax.f32 %v633, 0.0
    %v1036 = vmax.f32 %v636, 0.0
    %v1037 = vmax.f32 %v641, 0.0
    %v1038 = vmax.f32 %v644, 0.0
    %v1039 = vmax.f32 %v649, 0.0
    %v1040 = vmax.f32 %v652, 0.0
    %v1041 = vmax.f32 %v657, 0.0
    %v1042 = vmax.f32 %v660, 0.0
    %v1043 = vmax.f32 %v665, 0.0
    %v1044 = vmax.f32 %v668, 0.0
    %v1045 = vmax.f32 %v673, 0.0
    %v1046 = vmax.f32 %v676, 0.0
    %v1047 = vmax.f32 %v681, 0.0
    %v1048 = vmax.f32 %v684, 0.0
    %v1049 = vmax.f32 %v689, 0.0
    %v1050 = vmax.f32 %v692, 0.0
    %v1051 = vmax.f32 %v697, 0.0
    %v1052 = vmax.f32 %v700, 0.0
    %v1053 = vmax.f32 %v705, 0.0
    %v1054 = vmax.f32 %v708, 0.0
    %v1055 = vmax.f32 %v713, 0.0
    %v1056 = vmax.f32 %v716, 0.0
    %v1057 = vmax.f32 %v721, 0.0
    %v1058 = vmax.f32 %v724, 0.0
    %v1059 = vmax.f32 %v729, 0.0
    %v1060 = vmax.f32 %v732, 0.0
    %v1061 = vmax.f32 %v737, 0.0
    %v1062 = vmax.f32 %v740, 0.0
    %v1063 = vmax.f32 %v745, 0.0
    %v1064 = vmax.f32 %v748, 0.0
    %v1065 = vmax.f32 %v753, 0.0
    %v1066 = vmax.f32 %v756, 0.0
    %v1067 = vmax.f32 %v761, 0.0
    %v1068 = vmax.f32 %v764, 0.0
    %v1069 = vmax.f32 %v769, 0.0
    %v1070 = vmax.f32 %v772, 0.0
    %v1071 = vmax.f32 %v777, 0.0
    %v1072 = vmax.f32 %v780, 0.0
    %v1073 = vmax.f32 %v785, 0.0
    %v1074 = vmax.f32 %v788, 0.0
    %v1075 = vmax.f32 %v793, 0.0
    %v1076 = vmax.f32 %v796, 0.0
    %v1077 = vmax.f32 %v801, 0.0
    %v1078 = vmax.f32 %v804, 0.0
    %v1079 = vmax.f32 %v809, 0.0
    %v1080 = vmax.f32 %v812, 0.0
    %v1081 = vmax.f32 %v817, 0.0
    %v1082 = vmax.f32 %v820, 0.0
    %v1083 = vmax.f32 %v825, 0.0
    %v1084 = vmax.f32 %v828, 0.0
    %v1085 = vmax.f32 %v833, 0.0
    %v1086 = vmax.f32 %v836, 0.0
    %v1087 = vmax.f32 %v841, 0.0
    %v1088 = vmax.f32 %v844, 0.0
    %v1089 = vmax.f32 %v849, 0.0
    %v1090 = vmax.f32 %v852, 0.0
    %v1091 = vmax.f32 %v857, 0.0
    %v1092 = vmax.f32 %v860, 0.0
    %v1093 = vmax.f32 %v865, 0.0
    %v1094 = vmax.f32 %v868, 0.0
    %v1095 = vmax.f32 %v873, 0.0
    %v1096 = vmax.f32 %v876, 0.0
    %v1097 = vmax.f32 %v881, 0.0
    %v1098 = vmax.f32 %v884, 0.0
    %v1099 = vmax.f32 %v889, 0.0
    %v1100 = vmax.f32 %v892, 0.0
    %v1101 = vmax.f32 %v897, 0.0
    %v1102 = vmax.f32 %v900, 0.0
    %v1103 = vmax.f32 %v905, 0.0
    %v1104 = vmax.f32 %v908, 0.0
    %v1105 = vmax.f32 %v913, 0.0
    %v1106 = vmax.f32 %v916, 0.0
    %v1107 = vmax.f32 %v921, 0.0
    %v1108 = vmax.f32 %v924, 0.0
    %v1109 = vmax.f32 %v929, 0.0
    %v1110 = vmax.f32 %v932, 0.0
    %v1111 = vmax.f32 %v937, 0.0
    %v1112 = vmax.f32 %v940, 0.0
    %v1113 = vmax.f32 %v945, 0.0
    %v1114 = vmax.f32 %v948, 0.0
    %v1115 = vmax.f32 %v953, 0.0
    %v1116 = vmax.f32 %v956, 0.0
    %v1117 = vmax.f32 %v961, 0.0
    %v1118 = vmax.f32 %v964, 0.0
    %v1119 = vmax.f32 %v969, 0.0
    %v1120 = vmax.f32 %v972, 0.0
    %v1121 = vmax.f32 %v977, 0.0
    %v1122 = vmax.f32 %v980, 0.0
    %v1123 = vmax.f32 %v985, 0.0
    %v1124 = vmax.f32 %v988, 0.0
    %v1125 = vmax.f32 %v993, 0.0
    %v1126 = vmax.f32 %v996, 0.0
    %v1127 = vpack.c.bf16 %v1000, %v999
    %v1128 = vpack.c.bf16 %v1002, %v1001
    %v1129 = vpack.c.bf16 %v1004, %v1003
    %v1130 = vpack.c.bf16 %v1006, %v1005
    %v1131 = vpack.c.bf16 %v1008, %v1007
    %v1132 = vpack.c.bf16 %v1010, %v1009
    %v1133 = vpack.c.bf16 %v1012, %v1011
    %v1134 = vpack.c.bf16 %v1014, %v1013
    %v1135 = vpack.c.bf16 %v1016, %v1015
    %v1136 = vpack.c.bf16 %v1018, %v1017
    %v1137 = vpack.c.bf16 %v1020, %v1019
    %v1138 = vpack.c.bf16 %v1022, %v1021
    %v1139 = vpack.c.bf16 %v1024, %v1023
    %v1140 = vpack.c.bf16 %v1026, %v1025
    %v1141 = vpack.c.bf16 %v1028, %v1027
    %v1142 = vpack.c.bf16 %v1030, %v1029
    %v1143 = vpack.c.bf16 %v1032, %v1031
    %v1144 = vpack.c.bf16 %v1034, %v1033
    %v1145 = vpack.c.bf16 %v1036, %v1035
    %v1146 = vpack.c.bf16 %v1038, %v1037
    %v1147 = vpack.c.bf16 %v1040, %v1039
    %v1148 = vpack.c.bf16 %v1042, %v1041
    %v1149 = vpack.c.bf16 %v1044, %v1043
    %v1150 = vpack.c.bf16 %v1046, %v1045
    %v1151 = vpack.c.bf16 %v1048, %v1047
    %v1152 = vpack.c.bf16 %v1050, %v1049
    %v1153 = vpack.c.bf16 %v1052, %v1051
    %v1154 = vpack.c.bf16 %v1054, %v1053
    %v1155 = vpack.c.bf16 %v1056, %v1055
    %v1156 = vpack.c.bf16 %v1058, %v1057
    %v1157 = vpack.c.bf16 %v1060, %v1059
    %v1158 = vpack.c.bf16 %v1062, %v1061
    %v1159 = vpack.c.bf16 %v1064, %v1063
    %v1160 = vpack.c.bf16 %v1066, %v1065
    %v1161 = vpack.c.bf16 %v1068, %v1067
    %v1162 = vpack.c.bf16 %v1070, %v1069
    %v1163 = vpack.c.bf16 %v1072, %v1071
    %v1164 = vpack.c.bf16 %v1074, %v1073
    %v1165 = vpack.c.bf16 %v1076, %v1075
    %v1166 = vpack.c.bf16 %v1078, %v1077
    %v1167 = vpack.c.bf16 %v1080, %v1079
    %v1168 = vpack.c.bf16 %v1082, %v1081
    %v1169 = vpack.c.bf16 %v1084, %v1083
    %v1170 = vpack.c.bf16 %v1086, %v1085
    %v1171 = vpack.c.bf16 %v1088, %v1087
    %v1172 = vpack.c.bf16 %v1090, %v1089
    %v1173 = vpack.c.bf16 %v1092, %v1091
    %v1174 = vpack.c.bf16 %v1094, %v1093
    %v1175 = vpack.c.bf16 %v1096, %v1095
    %v1176 = vpack.c.bf16 %v1098, %v1097
    %v1177 = vpack.c.bf16 %v1100, %v1099
    %v1178 = vpack.c.bf16 %v1102, %v1101
    %v1179 = vpack.c.bf16 %v1104, %v1103
    %v1180 = vpack.c.bf16 %v1106, %v1105
    %v1181 = vpack.c.bf16 %v1108, %v1107
    %v1182 = vpack.c.bf16 %v1110, %v1109
    %v1183 = vpack.c.bf16 %v1112, %v1111
    %v1184 = vpack.c.bf16 %v1114, %v1113
    %v1185 = vpack.c.bf16 %v1116, %v1115
    %v1186 = vpack.c.bf16 %v1118, %v1117
    %v1187 = vpack.c.bf16 %v1120, %v1119
    %v1188 = vpack.c.bf16 %v1122, %v1121
    %v1189 = vpack.c.bf16 %v1124, %v1123
    %v1190 = vpack.c.bf16 %v1126, %v1125
    %v1191 = vld [vmem:[%s3] sm:$0xf]
    %v1192 = vld [vmem:[%s3 + $0x4] sm:$0xf]
    %v1193 = vld [vmem:[%s3 + $0x8] sm:$0xf]
    %v1194 = vld [vmem:[%s3 + $0xc] sm:$0xf]
    %v1195 = vld [vmem:[%s4] sm:$0x1]
    %v1197 = vlaneseq
    %v1198 = vshrl.u32 %v1197, 7
    %v1199 = vsub.s32 0, %v1198
    %v1200 = vrot.slane %v1195, %v1199
    %v1206 = vunpack.c.l.b16 %v1191
    %v1207 = vunpack.c.l.b16 %v1192
    %v1208 = vunpack.c.l.b16 %v1193
    %v1209 = vunpack.c.l.b16 %v1194
    %v1210 = vpack.c.b16 %v1207, %v1206
    %v1211 = vpack.c.b16 %v1209, %v1208
    %vm1214 = vcmask 261120
    %v1216 = vsel %vm1214, %v1127, 0
    %v1219 = vsel %vm1214, %v1128, 0
    %v1222 = vsel %vm1214, %v1129, 0
    %v1225 = vsel %vm1214, %v1130, 0
    %v1228 = vsel %vm1214, %v1131, 0
    %v1231 = vsel %vm1214, %v1132, 0
    %v1234 = vsel %vm1214, %v1133, 0
    %v1237 = vsel %vm1214, %v1134, 0
    %v1240 = vsel %vm1214, %v1135, 0
    %v1243 = vsel %vm1214, %v1136, 0
    %v1246 = vsel %vm1214, %v1137, 0
    %v1249 = vsel %vm1214, %v1138, 0
    %v1252 = vsel %vm1214, %v1139, 0
    %v1255 = vsel %vm1214, %v1140, 0
    %v1258 = vsel %vm1214, %v1141, 0
    %v1261 = vsel %vm1214, %v1142, 0
    %v1264 = vsel %vm1214, %v1143, 0
    %v1267 = vsel %vm1214, %v1144, 0
    %v1270 = vsel %vm1214, %v1145, 0
    %v1273 = vsel %vm1214, %v1146, 0
    %v1276 = vsel %vm1214, %v1147, 0
    %v1279 = vsel %vm1214, %v1148, 0
    %v1282 = vsel %vm1214, %v1149, 0
    %v1285 = vsel %vm1214, %v1150, 0
    %v1288 = vsel %vm1214, %v1151, 0
    %v1291 = vsel %vm1214, %v1152, 0
    %v1294 = vsel %vm1214, %v1153, 0
    %v1297 = vsel %vm1214, %v1154, 0
    %v1300 = vsel %vm1214, %v1155, 0
    %v1303 = vsel %vm1214, %v1156, 0
    %v1306 = vsel %vm1214, %v1157, 0
    %v1309 = vsel %vm1214, %v1158, 0
    %v1312 = vsel %vm1214, %v1159, 0
    %v1315 = vsel %vm1214, %v1160, 0
    %v1318 = vsel %vm1214, %v1161, 0
    %v1321 = vsel %vm1214, %v1162, 0
    %v1324 = vsel %vm1214, %v1163, 0
    %v1327 = vsel %vm1214, %v1164, 0
    %v1330 = vsel %vm1214, %v1165, 0
    %v1333 = vsel %vm1214, %v1166, 0
    %v1336 = vsel %vm1214, %v1167, 0
    %v1339 = vsel %vm1214, %v1168, 0
    %v1342 = vsel %vm1214, %v1169, 0
    %v1345 = vsel %vm1214, %v1170, 0
    %v1348 = vsel %vm1214, %v1171, 0
    %v1351 = vsel %vm1214, %v1172, 0
    %v1354 = vsel %vm1214, %v1173, 0
    %v1357 = vsel %vm1214, %v1174, 0
    %v1360 = vsel %vm1214, %v1175, 0
    %v1363 = vsel %vm1214, %v1176, 0
    %v1366 = vsel %vm1214, %v1177, 0
    %v1369 = vsel %vm1214, %v1178, 0
    %v1372 = vsel %vm1214, %v1179, 0
    %v1375 = vsel %vm1214, %v1180, 0
    %v1378 = vsel %vm1214, %v1181, 0
    %v1381 = vsel %vm1214, %v1182, 0
    %v1384 = vsel %vm1214, %v1183, 0
    %v1387 = vsel %vm1214, %v1184, 0
    %v1390 = vsel %vm1214, %v1185, 0
    %v1393 = vsel %vm1214, %v1186, 0
    %v1396 = vsel %vm1214, %v1187, 0
    %v1399 = vsel %vm1214, %v1188, 0
    %v1402 = vsel %vm1214, %v1189, 0
    %v1405 = vsel %vm1214, %v1190, 0
    %1407 = vmatprep.subr.bf16.mxu0 0
    %1408 = vmatpush1.bf16.msra.mxu0 %v1210
    %1409 = vmatprep.subr.bf16.mxu0 0
    %1410 = vmatpush1.bf16.msra.mxu0 %v1211
    %1411 = vmatprep.subr.bf16.mxu0 0
    %1412 = vmatpush1.bf16.msra.mxu0 0
    %1413 = vmatprep.subr.bf16.mxu0 0
    %1414 = vmatpush1.bf16.msra.mxu0 0
    %1415 = vmatprep.subr.bf16.mxu0 0
    %1416 = vmatpush1.bf16.msra.mxu0 0
    %1417 = vmatprep.subr.bf16.mxu0 0
    %1418 = vmatpush1.bf16.msra.mxu0 0
    %1419 = vmatprep.subr.bf16.mxu0 0
    %1420 = vmatpush1.bf16.msra.mxu0 0
    %1421 = vmatprep.subr.bf16.mxu0 0
    %1422 = vmatpush1.bf16.msra.mxu0 0
    %1423 = vmatprep.subr.bf16.mxu0 0
    %1424 = vmatpush1.bf16.msra.mxu0 0
    %1425 = vmatprep.subr.bf16.mxu0 0
    %1426 = vmatpush1.bf16.msra.mxu0 0
    %1427 = vmatprep.subr.bf16.mxu0 0
    %1428 = vmatpush1.bf16.msra.mxu0 0
    %1429 = vmatprep.subr.bf16.mxu0 0
    %1430 = vmatpush1.bf16.msra.mxu0 0
    %1431 = vmatprep.subr.bf16.mxu0 0
    %1432 = vmatpush1.bf16.msra.mxu0 0
    %1433 = vmatprep.subr.bf16.mxu0 0
    %1434 = vmatpush1.bf16.msra.mxu0 0
    %1435 = vmatprep.subr.bf16.mxu0 0
    %1436 = vmatpush1.bf16.msra.mxu0 0
    %1437 = vmatprep.subr.bf16.mxu0 0
    %1438 = vmatpush1.bf16.msra.mxu0 0
    %1439 = vmatprep.mubr.bf16.mxu0 0
    %1440 = vmatmul.mubr.bf16.gmra.mrb[0].mxu0 %v1216
    %v1441 = vpop.f32.mrb[0].mxu0
    %v1442 = vadd.f32 %v1200, %v1441
    %v1443 = vpop.f32.mrb[0].mxu0
    %v1444 = vpop.f32.mrb[0].mxu0
    %v1445 = vadd.f32 %v1200, %v1444
    %v1446 = vpop.f32.mrb[0].mxu0
    %1447 = vmatprep.mubr.bf16.mxu0 0
    %1448 = vmatmul.mubr.bf16.gmra.mrb[0].mxu0 %v1219
    %v1449 = vpop.f32.mrb[0].mxu0
    %v1450 = vadd.f32 %v1200, %v1449
    %v1451 = vpop.f32.mrb[0].mxu0
    %v1452 = vpop.f32.mrb[0].mxu0
    %v1453 = vadd.f32 %v1200, %v1452
    %v1454 = vpop.f32.mrb[0].mxu0
    %1455 = vmatprep.mubr.bf16.mxu0 0
    %1456 = vmatmul.mubr.bf16.gmra.mrb[0].mxu0 %v1222
    %v1457 = vpop.f32.mrb[0].mxu0
    %v1458 = vadd.f32 %v1200, %v1457
    %v1459 = vpop.f32.mrb[0].mxu0
    %v1460 = vpop.f32.mrb[0].mxu0
    %v1461 = vadd.f32 %v1200, %v1460
    %v1462 = vpop.f32.mrb[0].mxu0
    %1463 = vmatprep.mubr.bf16.mxu0 0
    %1464 = vmatmul.mubr.bf16.gmra.mrb[0].mxu0 %v1225
    %v1465 = vpop.f32.mrb[0].mxu0
    %v1466 = vadd.f32 %v1200, %v1465
    %v1467 = vpop.f32.mrb[0].mxu0
    %v1468 = vpop.f32.mrb[0].mxu0
    %v1469 = vadd.f32 %v1200, %v1468
    %v1470 = vpop.f32.mrb[0].mxu0
    %1471 = vmatprep.mubr.bf16.mxu0 0
    %1472 = vmatmul.mubr.bf16.gmra.mrb[0].mxu0 %v1228
    %v1473 = vpop.f32.mrb[0].mxu0
    %v1474 = vadd.f32 %v1200, %v1473
    %v1475 = vpop.f32.mrb[0].mxu0
    %v1476 = vpop.f32.mrb[0].mxu0
    %v1477 = vadd.f32 %v1200, %v1476
    %v1478 = vpop.f32.mrb[0].mxu0
    %1479 = vmatprep.mubr.bf16.mxu0 0
    %1480 = vmatmul.mubr.bf16.gmra.mrb[0].mxu0 %v1231
    %v1481 = vpop.f32.mrb[0].mxu0
    %v1482 = vadd.f32 %v1200, %v1481
    %v1483 = vpop.f32.mrb[0].mxu0
    %v1484 = vpop.f32.mrb[0].mxu0
    %v1485 = vadd.f32 %v1200, %v1484
    %v1486 = vpop.f32.mrb[0].mxu0
    %1487 = vmatprep.mubr.bf16.mxu0 0
    %1488 = vmatmul.mubr.bf16.gmra.mrb[0].mxu0 %v1234
    %v1489 = vpop.f32.mrb[0].mxu0
    %v1490 = vadd.f32 %v1200, %v1489
    %v1491 = vpop.f32.mrb[0].mxu0
    %v1492 = vpop.f32.mrb[0].mxu0
    %v1493 = vadd.f32 %v1200, %v1492
    %v1494 = vpop.f32.mrb[0].mxu0
    %1495 = vmatprep.mubr.bf16.mxu0 0
    %1496 = vmatmul.mubr.bf16.gmra.mrb[0].mxu0 %v1237
    %v1497 = vpop.f32.mrb[0].mxu0
    %v1498 = vadd.f32 %v1200, %v1497
    %v1499 = vpop.f32.mrb[0].mxu0
    %v1500 = vpop.f32.mrb[0].mxu0
    %v1501 = vadd.f32 %v1200, %v1500
    %v1502 = vpop.f32.mrb[0].mxu0
    %1503 = vmatprep.mubr.bf16.mxu0 0
    %1504 = vmatmul.mubr.bf16.gmra.mrb[0].mxu0 %v1240
    %v1505 = vpop.f32.mrb[0].mxu0
    %v1506 = vadd.f32 %v1200, %v1505
    %v1507 = vpop.f32.mrb[0].mxu0
    %v1508 = vpop.f32.mrb[0].mxu0
    %v1509 = vadd.f32 %v1200, %v1508
    %v1510 = vpop.f32.mrb[0].mxu0
    %1511 = vmatprep.mubr.bf16.mxu0 0
    %1512 = vmatmul.mubr.bf16.gmra.mrb[0].mxu0 %v1243
    %v1513 = vpop.f32.mrb[0].mxu0
    %v1514 = vadd.f32 %v1200, %v1513
    %v1515 = vpop.f32.mrb[0].mxu0
    %v1516 = vpop.f32.mrb[0].mxu0
    %v1517 = vadd.f32 %v1200, %v1516
    %v1518 = vpop.f32.mrb[0].mxu0
    %1519 = vmatprep.mubr.bf16.mxu0 0
    %1520 = vmatmul.mubr.bf16.gmra.mrb[0].mxu0 %v1246
    %v1521 = vpop.f32.mrb[0].mxu0
    %v1522 = vadd.f32 %v1200, %v1521
    %v1523 = vpop.f32.mrb[0].mxu0
    %v1524 = vpop.f32.mrb[0].mxu0
    %v1525 = vadd.f32 %v1200, %v1524
    %v1526 = vpop.f32.mrb[0].mxu0
    %1527 = vmatprep.mubr.bf16.mxu0 0
    %1528 = vmatmul.mubr.bf16.gmra.mrb[0].mxu0 %v1249
    %v1529 = vpop.f32.mrb[0].mxu0
    %v1530 = vadd.f32 %v1200, %v1529
    %v1531 = vpop.f32.mrb[0].mxu0
    %v1532 = vpop.f32.mrb[0].mxu0
    %v1533 = vadd.f32 %v1200, %v1532
    %v1534 = vpop.f32.mrb[0].mxu0
    %1535 = vmatprep.mubr.bf16.mxu0 0
    %1536 = vmatmul.mubr.bf16.gmra.mrb[0].mxu0 %v1252
    %v1537 = vpop.f32.mrb[0].mxu0
    %v1538 = vadd.f32 %v1200, %v1537
    %v1539 = vpop.f32.mrb[0].mxu0
    %v1540 = vpop.f32.mrb[0].mxu0
    %v1541 = vadd.f32 %v1200, %v1540
    %v1542 = vpop.f32.mrb[0].mxu0
    %1543 = vmatprep.mubr.bf16.mxu0 0
    %1544 = vmatmul.mubr.bf16.gmra.mrb[0].mxu0 %v1255
    %v1545 = vpop.f32.mrb[0].mxu0
    %v1546 = vadd.f32 %v1200, %v1545
    %v1547 = vpop.f32.mrb[0].mxu0
    %v1548 = vpop.f32.mrb[0].mxu0
    %v1549 = vadd.f32 %v1200, %v1548
    %v1550 = vpop.f32.mrb[0].mxu0
    %1551 = vmatprep.mubr.bf16.mxu0 0
    %1552 = vmatmul.mubr.bf16.gmra.mrb[0].mxu0 %v1258
    %v1553 = vpop.f32.mrb[0].mxu0
    %v1554 = vadd.f32 %v1200, %v1553
    %v1555 = vpop.f32.mrb[0].mxu0
    %v1556 = vpop.f32.mrb[0].mxu0
    %v1557 = vadd.f32 %v1200, %v1556
    %v1558 = vpop.f32.mrb[0].mxu0
    %1559 = vmatprep.mubr.bf16.mxu0 0
    %1560 = vmatmul.mubr.bf16.gmra.mrb[0].mxu0 %v1261
    %v1561 = vpop.f32.mrb[0].mxu0
    %v1562 = vadd.f32 %v1200, %v1561
    %v1563 = vpop.f32.mrb[0].mxu0
    %v1564 = vpop.f32.mrb[0].mxu0
    %v1565 = vadd.f32 %v1200, %v1564
    %v1566 = vpop.f32.mrb[0].mxu0
    %1567 = vmatprep.mubr.bf16.mxu0 0
    %1568 = vmatmul.mubr.bf16.gmra.mrb[0].mxu0 %v1264
    %v1569 = vpop.f32.mrb[0].mxu0
    %v1570 = vadd.f32 %v1200, %v1569
    %v1571 = vpop.f32.mrb[0].mxu0
    %v1572 = vpop.f32.mrb[0].mxu0
    %v1573 = vadd.f32 %v1200, %v1572
    %v1574 = vpop.f32.mrb[0].mxu0
    %1575 = vmatprep.mubr.bf16.mxu0 0
    %1576 = vmatmul.mubr.bf16.gmra.mrb[0].mxu0 %v1267
    %v1577 = vpop.f32.mrb[0].mxu0
    %v1578 = vadd.f32 %v1200, %v1577
    %v1579 = vpop.f32.mrb[0].mxu0
    %v1580 = vpop.f32.mrb[0].mxu0
    %v1581 = vadd.f32 %v1200, %v1580
    %v1582 = vpop.f32.mrb[0].mxu0
    %1583 = vmatprep.mubr.bf16.mxu0 0
    %1584 = vmatmul.mubr.bf16.gmra.mrb[0].mxu0 %v1270
    %v1585 = vpop.f32.mrb[0].mxu0
    %v1586 = vadd.f32 %v1200, %v1585
    %v1587 = vpop.f32.mrb[0].mxu0
    %v1588 = vpop.f32.mrb[0].mxu0
    %v1589 = vadd.f32 %v1200, %v1588
    %v1590 = vpop.f32.mrb[0].mxu0
    %1591 = vmatprep.mubr.bf16.mxu0 0
    %1592 = vmatmul.mubr.bf16.gmra.mrb[0].mxu0 %v1273
    %v1593 = vpop.f32.mrb[0].mxu0
    %v1594 = vadd.f32 %v1200, %v1593
    %v1595 = vpop.f32.mrb[0].mxu0
    %v1596 = vpop.f32.mrb[0].mxu0
    %v1597 = vadd.f32 %v1200, %v1596
    %v1598 = vpop.f32.mrb[0].mxu0
    %1599 = vmatprep.mubr.bf16.mxu0 0
    %1600 = vmatmul.mubr.bf16.gmra.mrb[0].mxu0 %v1276
    %v1601 = vpop.f32.mrb[0].mxu0
    %v1602 = vadd.f32 %v1200, %v1601
    %v1603 = vpop.f32.mrb[0].mxu0
    %v1604 = vpop.f32.mrb[0].mxu0
    %v1605 = vadd.f32 %v1200, %v1604
    %v1606 = vpop.f32.mrb[0].mxu0
    %1607 = vmatprep.mubr.bf16.mxu0 0
    %1608 = vmatmul.mubr.bf16.gmra.mrb[0].mxu0 %v1279
    %v1609 = vpop.f32.mrb[0].mxu0
    %v1610 = vadd.f32 %v1200, %v1609
    %v1611 = vpop.f32.mrb[0].mxu0
    %v1612 = vpop.f32.mrb[0].mxu0
    %v1613 = vadd.f32 %v1200, %v1612
    %v1614 = vpop.f32.mrb[0].mxu0
    %1615 = vmatprep.mubr.bf16.mxu0 0
    %1616 = vmatmul.mubr.bf16.gmra.mrb[0].mxu0 %v1282
    %v1617 = vpop.f32.mrb[0].mxu0
    %v1618 = vadd.f32 %v1200, %v1617
    %v1619 = vpop.f32.mrb[0].mxu0
    %v1620 = vpop.f32.mrb[0].mxu0
    %v1621 = vadd.f32 %v1200, %v1620
    %v1622 = vpop.f32.mrb[0].mxu0
    %1623 = vmatprep.mubr.bf16.mxu0 0
    %1624 = vmatmul.mubr.bf16.gmra.mrb[0].mxu0 %v1285
    %v1625 = vpop.f32.mrb[0].mxu0
    %v1626 = vadd.f32 %v1200, %v1625
    %v1627 = vpop.f32.mrb[0].mxu0
    %v1628 = vpop.f32.mrb[0].mxu0
    %v1629 = vadd.f32 %v1200, %v1628
    %v1630 = vpop.f32.mrb[0].mxu0
    %1631 = vmatprep.mubr.bf16.mxu0 0
    %1632 = vmatmul.mubr.bf16.gmra.mrb[0].mxu0 %v1288
    %v1633 = vpop.f32.mrb[0].mxu0
    %v1634 = vadd.f32 %v1200, %v1633
    %v1635 = vpop.f32.mrb[0].mxu0
    %v1636 = vpop.f32.mrb[0].mxu0
    %v1637 = vadd.f32 %v1200, %v1636
    %v1638 = vpop.f32.mrb[0].mxu0
    %1639 = vmatprep.mubr.bf16.mxu0 0
    %1640 = vmatmul.mubr.bf16.gmra.mrb[0].mxu0 %v1291
    %v1641 = vpop.f32.mrb[0].mxu0
    %v1642 = vadd.f32 %v1200, %v1641
    %v1643 = vpop.f32.mrb[0].mxu0
    %v1644 = vpop.f32.mrb[0].mxu0
    %v1645 = vadd.f32 %v1200, %v1644
    %v1646 = vpop.f32.mrb[0].mxu0
    %1647 = vmatprep.mubr.bf16.mxu0 0
    %1648 = vmatmul.mubr.bf16.gmra.mrb[0].mxu0 %v1294
    %v1649 = vpop.f32.mrb[0].mxu0
    %v1650 = vadd.f32 %v1200, %v1649
    %v1651 = vpop.f32.mrb[0].mxu0
    %v1652 = vpop.f32.mrb[0].mxu0
    %v1653 = vadd.f32 %v1200, %v1652
    %v1654 = vpop.f32.mrb[0].mxu0
    %1655 = vmatprep.mubr.bf16.mxu0 0
    %1656 = vmatmul.mubr.bf16.gmra.mrb[0].mxu0 %v1297
    %v1657 = vpop.f32.mrb[0].mxu0
    %v1658 = vadd.f32 %v1200, %v1657
    %v1659 = vpop.f32.mrb[0].mxu0
    %v1660 = vpop.f32.mrb[0].mxu0
    %v1661 = vadd.f32 %v1200, %v1660
    %v1662 = vpop.f32.mrb[0].mxu0
    %1663 = vmatprep.mubr.bf16.mxu0 0
    %1664 = vmatmul.mubr.bf16.gmra.mrb[0].mxu0 %v1300
    %v1665 = vpop.f32.mrb[0].mxu0
    %v1666 = vadd.f32 %v1200, %v1665
    %v1667 = vpop.f32.mrb[0].mxu0
    %v1668 = vpop.f32.mrb[0].mxu0
    %v1669 = vadd.f32 %v1200, %v1668
    %v1670 = vpop.f32.mrb[0].mxu0
    %1671 = vmatprep.mubr.bf16.mxu0 0
    %1672 = vmatmul.mubr.bf16.gmra.mrb[0].mxu0 %v1303
    %v1673 = vpop.f32.mrb[0].mxu0
    %v1674 = vadd.f32 %v1200, %v1673
    %v1675 = vpop.f32.mrb[0].mxu0
    %v1676 = vpop.f32.mrb[0].mxu0
    %v1677 = vadd.f32 %v1200, %v1676
    %v1678 = vpop.f32.mrb[0].mxu0
    %1679 = vmatprep.mubr.bf16.mxu0 0
    %1680 = vmatmul.mubr.bf16.gmra.mrb[0].mxu0 %v1306
    %v1681 = vpop.f32.mrb[0].mxu0
    %v1682 = vadd.f32 %v1200, %v1681
    %v1683 = vpop.f32.mrb[0].mxu0
    %v1684 = vpop.f32.mrb[0].mxu0
    %v1685 = vadd.f32 %v1200, %v1684
    %v1686 = vpop.f32.mrb[0].mxu0
    %1687 = vmatprep.mubr.bf16.mxu0 0
    %1688 = vmatmul.mubr.bf16.gmra.mrb[0].mxu0 %v1309
    %v1689 = vpop.f32.mrb[0].mxu0
    %v1690 = vadd.f32 %v1200, %v1689
    %v1691 = vpop.f32.mrb[0].mxu0
    %v1692 = vpop.f32.mrb[0].mxu0
    %v1693 = vadd.f32 %v1200, %v1692
    %v1694 = vpop.f32.mrb[0].mxu0
    %1695 = vmatprep.mubr.bf16.mxu0 0
    %1696 = vmatmul.mubr.bf16.gmra.mrb[0].mxu0 %v1312
    %v1697 = vpop.f32.mrb[0].mxu0
    %v1698 = vadd.f32 %v1200, %v1697
    %v1699 = vpop.f32.mrb[0].mxu0
    %v1700 = vpop.f32.mrb[0].mxu0
    %v1701 = vadd.f32 %v1200, %v1700
    %v1702 = vpop.f32.mrb[0].mxu0
    %1703 = vmatprep.mubr.bf16.mxu0 0
    %1704 = vmatmul.mubr.bf16.gmra.mrb[0].mxu0 %v1315
    %v1705 = vpop.f32.mrb[0].mxu0
    %v1706 = vadd.f32 %v1200, %v1705
    %v1707 = vpop.f32.mrb[0].mxu0
    %v1708 = vpop.f32.mrb[0].mxu0
    %v1709 = vadd.f32 %v1200, %v1708
    %v1710 = vpop.f32.mrb[0].mxu0
    %1711 = vmatprep.mubr.bf16.mxu0 0
    %1712 = vmatmul.mubr.bf16.gmra.mrb[0].mxu0 %v1318
    %v1713 = vpop.f32.mrb[0].mxu0
    %v1714 = vadd.f32 %v1200, %v1713
    %v1715 = vpop.f32.mrb[0].mxu0
    %v1716 = vpop.f32.mrb[0].mxu0
    %v1717 = vadd.f32 %v1200, %v1716
    %v1718 = vpop.f32.mrb[0].mxu0
    %1719 = vmatprep.mubr.bf16.mxu0 0
    %1720 = vmatmul.mubr.bf16.gmra.mrb[0].mxu0 %v1321
    %v1721 = vpop.f32.mrb[0].mxu0
    %v1722 = vadd.f32 %v1200, %v1721
    %v1723 = vpop.f32.mrb[0].mxu0
    %v1724 = vpop.f32.mrb[0].mxu0
    %v1725 = vadd.f32 %v1200, %v1724
    %v1726 = vpop.f32.mrb[0].mxu0
    %1727 = vmatprep.mubr.bf16.mxu0 0
    %1728 = vmatmul.mubr.bf16.gmra.mrb[0].mxu0 %v1324
    %v1729 = vpop.f32.mrb[0].mxu0
    %v1730 = vadd.f32 %v1200, %v1729
    %v1731 = vpop.f32.mrb[0].mxu0
    %v1732 = vpop.f32.mrb[0].mxu0
    %v1733 = vadd.f32 %v1200, %v1732
    %v1734 = vpop.f32.mrb[0].mxu0
    %1735 = vmatprep.mubr.bf16.mxu0 0
    %1736 = vmatmul.mubr.bf16.gmra.mrb[0].mxu0 %v1327
    %v1737 = vpop.f32.mrb[0].mxu0
    %v1738 = vadd.f32 %v1200, %v1737
    %v1739 = vpop.f32.mrb[0].mxu0
    %v1740 = vpop.f32.mrb[0].mxu0
    %v1741 = vadd.f32 %v1200, %v1740
    %v1742 = vpop.f32.mrb[0].mxu0
    %1743 = vmatprep.mubr.bf16.mxu0 0
    %1744 = vmatmul.mubr.bf16.gmra.mrb[0].mxu0 %v1330
    %v1745 = vpop.f32.mrb[0].mxu0
    %v1746 = vadd.f32 %v1200, %v1745
    %v1747 = vpop.f32.mrb[0].mxu0
    %v1748 = vpop.f32.mrb[0].mxu0
    %v1749 = vadd.f32 %v1200, %v1748
    %v1750 = vpop.f32.mrb[0].mxu0
    %1751 = vmatprep.mubr.bf16.mxu0 0
    %1752 = vmatmul.mubr.bf16.gmra.mrb[0].mxu0 %v1333
    %v1753 = vpop.f32.mrb[0].mxu0
    %v1754 = vadd.f32 %v1200, %v1753
    %v1755 = vpop.f32.mrb[0].mxu0
    %v1756 = vpop.f32.mrb[0].mxu0
    %v1757 = vadd.f32 %v1200, %v1756
    %v1758 = vpop.f32.mrb[0].mxu0
    %1759 = vmatprep.mubr.bf16.mxu0 0
    %1760 = vmatmul.mubr.bf16.gmra.mrb[0].mxu0 %v1336
    %v1761 = vpop.f32.mrb[0].mxu0
    %v1762 = vadd.f32 %v1200, %v1761
    %v1763 = vpop.f32.mrb[0].mxu0
    %v1764 = vpop.f32.mrb[0].mxu0
    %v1765 = vadd.f32 %v1200, %v1764
    %v1766 = vpop.f32.mrb[0].mxu0
    %1767 = vmatprep.mubr.bf16.mxu0 0
    %1768 = vmatmul.mubr.bf16.gmra.mrb[0].mxu0 %v1339
    %v1769 = vpop.f32.mrb[0].mxu0
    %v1770 = vadd.f32 %v1200, %v1769
    %v1771 = vpop.f32.mrb[0].mxu0
    %v1772 = vpop.f32.mrb[0].mxu0
    %v1773 = vadd.f32 %v1200, %v1772
    %v1774 = vpop.f32.mrb[0].mxu0
    %1775 = vmatprep.mubr.bf16.mxu0 0
    %1776 = vmatmul.mubr.bf16.gmra.mrb[0].mxu0 %v1342
    %v1777 = vpop.f32.mrb[0].mxu0
    %v1778 = vadd.f32 %v1200, %v1777
    %v1779 = vpop.f32.mrb[0].mxu0
    %v1780 = vpop.f32.mrb[0].mxu0
    %v1781 = vadd.f32 %v1200, %v1780
    %v1782 = vpop.f32.mrb[0].mxu0
    %1783 = vmatprep.mubr.bf16.mxu0 0
    %1784 = vmatmul.mubr.bf16.gmra.mrb[0].mxu0 %v1345
    %v1785 = vpop.f32.mrb[0].mxu0
    %v1786 = vadd.f32 %v1200, %v1785
    %v1787 = vpop.f32.mrb[0].mxu0
    %v1788 = vpop.f32.mrb[0].mxu0
    %v1789 = vadd.f32 %v1200, %v1788
    %v1790 = vpop.f32.mrb[0].mxu0
    %1791 = vmatprep.mubr.bf16.mxu0 0
    %1792 = vmatmul.mubr.bf16.gmra.mrb[0].mxu0 %v1348
    %v1793 = vpop.f32.mrb[0].mxu0
    %v1794 = vadd.f32 %v1200, %v1793
    %v1795 = vpop.f32.mrb[0].mxu0
    %v1796 = vpop.f32.mrb[0].mxu0
    %v1797 = vadd.f32 %v1200, %v1796
    %v1798 = vpop.f32.mrb[0].mxu0
    %1799 = vmatprep.mubr.bf16.mxu0 0
    %1800 = vmatmul.mubr.bf16.gmra.mrb[0].mxu0 %v1351
    %v1801 = vpop.f32.mrb[0].mxu0
    %v1802 = vadd.f32 %v1200, %v1801
    %v1803 = vpop.f32.mrb[0].mxu0
    %v1804 = vpop.f32.mrb[0].mxu0
    %v1805 = vadd.f32 %v1200, %v1804
    %v1806 = vpop.f32.mrb[0].mxu0
    %1807 = vmatprep.mubr.bf16.mxu0 0
    %1808 = vmatmul.mubr.bf16.gmra.mrb[0].mxu0 %v1354
    %v1809 = vpop.f32.mrb[0].mxu0
    %v1810 = vadd.f32 %v1200, %v1809
    %v1811 = vpop.f32.mrb[0].mxu0
    %v1812 = vpop.f32.mrb[0].mxu0
    %v1813 = vadd.f32 %v1200, %v1812
    %v1814 = vpop.f32.mrb[0].mxu0
    %1815 = vmatprep.mubr.bf16.mxu0 0
    %1816 = vmatmul.mubr.bf16.gmra.mrb[0].mxu0 %v1357
    %v1817 = vpop.f32.mrb[0].mxu0
    %v1818 = vadd.f32 %v1200, %v1817
    %v1819 = vpop.f32.mrb[0].mxu0
    %v1820 = vpop.f32.mrb[0].mxu0
    %v1821 = vadd.f32 %v1200, %v1820
    %v1822 = vpop.f32.mrb[0].mxu0
    %1823 = vmatprep.mubr.bf16.mxu0 0
    %1824 = vmatmul.mubr.bf16.gmra.mrb[0].mxu0 %v1360
    %v1825 = vpop.f32.mrb[0].mxu0
    %v1826 = vadd.f32 %v1200, %v1825
    %v1827 = vpop.f32.mrb[0].mxu0
    %v1828 = vpop.f32.mrb[0].mxu0
    %v1829 = vadd.f32 %v1200, %v1828
    %v1830 = vpop.f32.mrb[0].mxu0
    %1831 = vmatprep.mubr.bf16.mxu0 0
    %1832 = vmatmul.mubr.bf16.gmra.mrb[0].mxu0 %v1363
    %v1833 = vpop.f32.mrb[0].mxu0
    %v1834 = vadd.f32 %v1200, %v1833
    %v1835 = vpop.f32.mrb[0].mxu0
    %v1836 = vpop.f32.mrb[0].mxu0
    %v1837 = vadd.f32 %v1200, %v1836
    %v1838 = vpop.f32.mrb[0].mxu0
    %1839 = vmatprep.mubr.bf16.mxu0 0
    %1840 = vmatmul.mubr.bf16.gmra.mrb[0].mxu0 %v1366
    %v1841 = vpop.f32.mrb[0].mxu0
    %v1842 = vadd.f32 %v1200, %v1841
    %v1843 = vpop.f32.mrb[0].mxu0
    %v1844 = vpop.f32.mrb[0].mxu0
    %v1845 = vadd.f32 %v1200, %v1844
    %v1846 = vpop.f32.mrb[0].mxu0
    %1847 = vmatprep.mubr.bf16.mxu0 0
    %1848 = vmatmul.mubr.bf16.gmra.mrb[0].mxu0 %v1369
    %v1849 = vpop.f32.mrb[0].mxu0
    %v1850 = vadd.f32 %v1200, %v1849
    %v1851 = vpop.f32.mrb[0].mxu0
    %v1852 = vpop.f32.mrb[0].mxu0
    %v1853 = vadd.f32 %v1200, %v1852
    %v1854 = vpop.f32.mrb[0].mxu0
    %1855 = vmatprep.mubr.bf16.mxu0 0
    %1856 = vmatmul.mubr.bf16.gmra.mrb[0].mxu0 %v1372
    %v1857 = vpop.f32.mrb[0].mxu0
    %v1858 = vadd.f32 %v1200, %v1857
    %v1859 = vpop.f32.mrb[0].mxu0
    %v1860 = vpop.f32.mrb[0].mxu0
    %v1861 = vadd.f32 %v1200, %v1860
    %v1862 = vpop.f32.mrb[0].mxu0
    %1863 = vmatprep.mubr.bf16.mxu0 0
    %1864 = vmatmul.mubr.bf16.gmra.mrb[0].mxu0 %v1375
    %v1865 = vpop.f32.mrb[0].mxu0
    %v1866 = vadd.f32 %v1200, %v1865
    %v1867 = vpop.f32.mrb[0].mxu0
    %v1868 = vpop.f32.mrb[0].mxu0
    %v1869 = vadd.f32 %v1200, %v1868
    %v1870 = vpop.f32.mrb[0].mxu0
    %1871 = vmatprep.mubr.bf16.mxu0 0
    %1872 = vmatmul.mubr.bf16.gmra.mrb[0].mxu0 %v1378
    %v1873 = vpop.f32.mrb[0].mxu0
    %v1874 = vadd.f32 %v1200, %v1873
    %v1875 = vpop.f32.mrb[0].mxu0
    %v1876 = vpop.f32.mrb[0].mxu0
    %v1877 = vadd.f32 %v1200, %v1876
    %v1878 = vpop.f32.mrb[0].mxu0
    %1879 = vmatprep.mubr.bf16.mxu0 0
    %1880 = vmatmul.mubr.bf16.gmra.mrb[0].mxu0 %v1381
    %v1881 = vpop.f32.mrb[0].mxu0
    %v1882 = vadd.f32 %v1200, %v1881
    %v1883 = vpop.f32.mrb[0].mxu0
    %v1884 = vpop.f32.mrb[0].mxu0
    %v1885 = vadd.f32 %v1200, %v1884
    %v1886 = vpop.f32.mrb[0].mxu0
    %1887 = vmatprep.mubr.bf16.mxu0 0
    %1888 = vmatmul.mubr.bf16.gmra.mrb[0].mxu0 %v1384
    %v1889 = vpop.f32.mrb[0].mxu0
    %v1890 = vadd.f32 %v1200, %v1889
    %v1891 = vpop.f32.mrb[0].mxu0
    %v1892 = vpop.f32.mrb[0].mxu0
    %v1893 = vadd.f32 %v1200, %v1892
    %v1894 = vpop.f32.mrb[0].mxu0
    %1895 = vmatprep.mubr.bf16.mxu0 0
    %1896 = vmatmul.mubr.bf16.gmra.mrb[0].mxu0 %v1387
    %v1897 = vpop.f32.mrb[0].mxu0
    %v1898 = vadd.f32 %v1200, %v1897
    %v1899 = vpop.f32.mrb[0].mxu0
    %v1900 = vpop.f32.mrb[0].mxu0
    %v1901 = vadd.f32 %v1200, %v1900
    %v1902 = vpop.f32.mrb[0].mxu0
    %1903 = vmatprep.mubr.bf16.mxu0 0
    %1904 = vmatmul.mubr.bf16.gmra.mrb[0].mxu0 %v1390
    %v1905 = vpop.f32.mrb[0].mxu0
    %v1906 = vadd.f32 %v1200, %v1905
    %v1907 = vpop.f32.mrb[0].mxu0
    %v1908 = vpop.f32.mrb[0].mxu0
    %v1909 = vadd.f32 %v1200, %v1908
    %v1910 = vpop.f32.mrb[0].mxu0
    %1911 = vmatprep.mubr.bf16.mxu0 0
    %1912 = vmatmul.mubr.bf16.gmra.mrb[0].mxu0 %v1393
    %v1913 = vpop.f32.mrb[0].mxu0
    %v1914 = vadd.f32 %v1200, %v1913
    %v1915 = vpop.f32.mrb[0].mxu0
    %v1916 = vpop.f32.mrb[0].mxu0
    %v1917 = vadd.f32 %v1200, %v1916
    %v1918 = vpop.f32.mrb[0].mxu0
    %1919 = vmatprep.mubr.bf16.mxu0 0
    %1920 = vmatmul.mubr.bf16.gmra.mrb[0].mxu0 %v1396
    %v1921 = vpop.f32.mrb[0].mxu0
    %v1922 = vadd.f32 %v1200, %v1921
    %v1923 = vpop.f32.mrb[0].mxu0
    %v1924 = vpop.f32.mrb[0].mxu0
    %v1925 = vadd.f32 %v1200, %v1924
    %v1926 = vpop.f32.mrb[0].mxu0
    %1927 = vmatprep.mubr.bf16.mxu0 0
    %1928 = vmatmul.mubr.bf16.gmra.mrb[0].mxu0 %v1399
    %v1929 = vpop.f32.mrb[0].mxu0
    %v1930 = vadd.f32 %v1200, %v1929
    %v1931 = vpop.f32.mrb[0].mxu0
    %v1932 = vpop.f32.mrb[0].mxu0
    %v1933 = vadd.f32 %v1200, %v1932
    %v1934 = vpop.f32.mrb[0].mxu0
    %1935 = vmatprep.mubr.bf16.mxu0 0
    %1936 = vmatmul.mubr.bf16.gmra.mrb[0].mxu0 %v1402
    %v1937 = vpop.f32.mrb[0].mxu0
    %v1938 = vadd.f32 %v1200, %v1937
    %v1939 = vpop.f32.mrb[0].mxu0
    %v1940 = vpop.f32.mrb[0].mxu0
    %v1941 = vadd.f32 %v1200, %v1940
    %v1942 = vpop.f32.mrb[0].mxu0
    %1943 = vmatprep.mubr.bf16.mxu0 0
    %1944 = vmatmul.mubr.bf16.gmra.mrb[0].mxu0 %v1405
    %v1945 = vpop.f32.mrb[0].mxu0
    %v1946 = vadd.f32 %v1200, %v1945
    %v1947 = vpop.f32.mrb[0].mxu0
    %v1948 = vpop.f32.mrb[0].mxu0
    %v1949 = vadd.f32 %v1200, %v1948
    %v1950 = vpop.f32.mrb[0].mxu0
    %1951 = vdwg.mxu0
    %v1952 = vmax.f32 %v1442, 0.0
    %v1953 = vmax.f32 %v1445, 0.0
    %v1954 = vmax.f32 %v1450, 0.0
    %v1955 = vmax.f32 %v1453, 0.0
    %v1956 = vmax.f32 %v1458, 0.0
    %v1957 = vmax.f32 %v1461, 0.0
    %v1958 = vmax.f32 %v1466, 0.0
    %v1959 = vmax.f32 %v1469, 0.0
    %v1960 = vmax.f32 %v1474, 0.0
    %v1961 = vmax.f32 %v1477, 0.0
    %v1962 = vmax.f32 %v1482, 0.0
    %v1963 = vmax.f32 %v1485, 0.0
    %v1964 = vmax.f32 %v1490, 0.0
    %v1965 = vmax.f32 %v1493, 0.0
    %v1966 = vmax.f32 %v1498, 0.0
    %v1967 = vmax.f32 %v1501, 0.0
    %v1968 = vmax.f32 %v1506, 0.0
    %v1969 = vmax.f32 %v1509, 0.0
    %v1970 = vmax.f32 %v1514, 0.0
    %v1971 = vmax.f32 %v1517, 0.0
    %v1972 = vmax.f32 %v1522, 0.0
    %v1973 = vmax.f32 %v1525, 0.0
    %v1974 = vmax.f32 %v1530, 0.0
    %v1975 = vmax.f32 %v1533, 0.0
    %v1976 = vmax.f32 %v1538, 0.0
    %v1977 = vmax.f32 %v1541, 0.0
    %v1978 = vmax.f32 %v1546, 0.0
    %v1979 = vmax.f32 %v1549, 0.0
    %v1980 = vmax.f32 %v1554, 0.0
    %v1981 = vmax.f32 %v1557, 0.0
    %v1982 = vmax.f32 %v1562, 0.0
    %v1983 = vmax.f32 %v1565, 0.0
    %v1984 = vmax.f32 %v1570, 0.0
    %v1985 = vmax.f32 %v1573, 0.0
    %v1986 = vmax.f32 %v1578, 0.0
    %v1987 = vmax.f32 %v1581, 0.0
    %v1988 = vmax.f32 %v1586, 0.0
    %v1989 = vmax.f32 %v1589, 0.0
    %v1990 = vmax.f32 %v1594, 0.0
    %v1991 = vmax.f32 %v1597, 0.0
    %v1992 = vmax.f32 %v1602, 0.0
    %v1993 = vmax.f32 %v1605, 0.0
    %v1994 = vmax.f32 %v1610, 0.0
    %v1995 = vmax.f32 %v1613, 0.0
    %v1996 = vmax.f32 %v1618, 0.0
    %v1997 = vmax.f32 %v1621, 0.0
    %v1998 = vmax.f32 %v1626, 0.0
    %v1999 = vmax.f32 %v1629, 0.0
    %v2000 = vmax.f32 %v1634, 0.0
    %v2001 = vmax.f32 %v1637, 0.0
    %v2002 = vmax.f32 %v1642, 0.0
    %v2003 = vmax.f32 %v1645, 0.0
    %v2004 = vmax.f32 %v1650, 0.0
    %v2005 = vmax.f32 %v1653, 0.0
    %v2006 = vmax.f32 %v1658, 0.0
    %v2007 = vmax.f32 %v1661, 0.0
    %v2008 = vmax.f32 %v1666, 0.0
    %v2009 = vmax.f32 %v1669, 0.0
    %v2010 = vmax.f32 %v1674, 0.0
    %v2011 = vmax.f32 %v1677, 0.0
    %v2012 = vmax.f32 %v1682, 0.0
    %v2013 = vmax.f32 %v1685, 0.0
    %v2014 = vmax.f32 %v1690, 0.0
    %v2015 = vmax.f32 %v1693, 0.0
    %v2016 = vmax.f32 %v1698, 0.0
    %v2017 = vmax.f32 %v1701, 0.0
    %v2018 = vmax.f32 %v1706, 0.0
    %v2019 = vmax.f32 %v1709, 0.0
    %v2020 = vmax.f32 %v1714, 0.0
    %v2021 = vmax.f32 %v1717, 0.0
    %v2022 = vmax.f32 %v1722, 0.0
    %v2023 = vmax.f32 %v1725, 0.0
    %v2024 = vmax.f32 %v1730, 0.0
    %v2025 = vmax.f32 %v1733, 0.0
    %v2026 = vmax.f32 %v1738, 0.0
    %v2027 = vmax.f32 %v1741, 0.0
    %v2028 = vmax.f32 %v1746, 0.0
    %v2029 = vmax.f32 %v1749, 0.0
    %v2030 = vmax.f32 %v1754, 0.0
    %v2031 = vmax.f32 %v1757, 0.0
    %v2032 = vmax.f32 %v1762, 0.0
    %v2033 = vmax.f32 %v1765, 0.0
    %v2034 = vmax.f32 %v1770, 0.0
    %v2035 = vmax.f32 %v1773, 0.0
    %v2036 = vmax.f32 %v1778, 0.0
    %v2037 = vmax.f32 %v1781, 0.0
    %v2038 = vmax.f32 %v1786, 0.0
    %v2039 = vmax.f32 %v1789, 0.0
    %v2040 = vmax.f32 %v1794, 0.0
    %v2041 = vmax.f32 %v1797, 0.0
    %v2042 = vmax.f32 %v1802, 0.0
    %v2043 = vmax.f32 %v1805, 0.0
    %v2044 = vmax.f32 %v1810, 0.0
    %v2045 = vmax.f32 %v1813, 0.0
    %v2046 = vmax.f32 %v1818, 0.0
    %v2047 = vmax.f32 %v1821, 0.0
    %v2048 = vmax.f32 %v1826, 0.0
    %v2049 = vmax.f32 %v1829, 0.0
    %v2050 = vmax.f32 %v1834, 0.0
    %v2051 = vmax.f32 %v1837, 0.0
    %v2052 = vmax.f32 %v1842, 0.0
    %v2053 = vmax.f32 %v1845, 0.0
    %v2054 = vmax.f32 %v1850, 0.0
    %v2055 = vmax.f32 %v1853, 0.0
    %v2056 = vmax.f32 %v1858, 0.0
    %v2057 = vmax.f32 %v1861, 0.0
    %v2058 = vmax.f32 %v1866, 0.0
    %v2059 = vmax.f32 %v1869, 0.0
    %v2060 = vmax.f32 %v1874, 0.0
    %v2061 = vmax.f32 %v1877, 0.0
    %v2062 = vmax.f32 %v1882, 0.0
    %v2063 = vmax.f32 %v1885, 0.0
    %v2064 = vmax.f32 %v1890, 0.0
    %v2065 = vmax.f32 %v1893, 0.0
    %v2066 = vmax.f32 %v1898, 0.0
    %v2067 = vmax.f32 %v1901, 0.0
    %v2068 = vmax.f32 %v1906, 0.0
    %v2069 = vmax.f32 %v1909, 0.0
    %v2070 = vmax.f32 %v1914, 0.0
    %v2071 = vmax.f32 %v1917, 0.0
    %v2072 = vmax.f32 %v1922, 0.0
    %v2073 = vmax.f32 %v1925, 0.0
    %v2074 = vmax.f32 %v1930, 0.0
    %v2075 = vmax.f32 %v1933, 0.0
    %v2076 = vmax.f32 %v1938, 0.0
    %v2077 = vmax.f32 %v1941, 0.0
    %v2078 = vmax.f32 %v1946, 0.0
    %v2079 = vmax.f32 %v1949, 0.0
    %v2080 = vld [vmem:[%s5] sm:$0x1]
    %v2081 = vpack.c.bf16 %v1953, %v1952
    %v2082 = vpack.c.bf16 %v1955, %v1954
    %v2083 = vpack.c.bf16 %v1957, %v1956
    %v2084 = vpack.c.bf16 %v1959, %v1958
    %v2085 = vpack.c.bf16 %v1961, %v1960
    %v2086 = vpack.c.bf16 %v1963, %v1962
    %v2087 = vpack.c.bf16 %v1965, %v1964
    %v2088 = vpack.c.bf16 %v1967, %v1966
    %v2089 = vpack.c.bf16 %v1969, %v1968
    %v2090 = vpack.c.bf16 %v1971, %v1970
    %v2091 = vpack.c.bf16 %v1973, %v1972
    %v2092 = vpack.c.bf16 %v1975, %v1974
    %v2093 = vpack.c.bf16 %v1977, %v1976
    %v2094 = vpack.c.bf16 %v1979, %v1978
    %v2095 = vpack.c.bf16 %v1981, %v1980
    %v2096 = vpack.c.bf16 %v1983, %v1982
    %v2097 = vpack.c.bf16 %v1985, %v1984
    %v2098 = vpack.c.bf16 %v1987, %v1986
    %v2099 = vpack.c.bf16 %v1989, %v1988
    %v2100 = vpack.c.bf16 %v1991, %v1990
    %v2101 = vpack.c.bf16 %v1993, %v1992
    %v2102 = vpack.c.bf16 %v1995, %v1994
    %v2103 = vpack.c.bf16 %v1997, %v1996
    %v2104 = vpack.c.bf16 %v1999, %v1998
    %v2105 = vpack.c.bf16 %v2001, %v2000
    %v2106 = vpack.c.bf16 %v2003, %v2002
    %v2107 = vpack.c.bf16 %v2005, %v2004
    %v2108 = vpack.c.bf16 %v2007, %v2006
    %v2109 = vpack.c.bf16 %v2009, %v2008
    %v2110 = vpack.c.bf16 %v2011, %v2010
    %v2111 = vpack.c.bf16 %v2013, %v2012
    %v2112 = vpack.c.bf16 %v2015, %v2014
    %v2113 = vpack.c.bf16 %v2017, %v2016
    %v2114 = vpack.c.bf16 %v2019, %v2018
    %v2115 = vpack.c.bf16 %v2021, %v2020
    %v2116 = vpack.c.bf16 %v2023, %v2022
    %v2117 = vpack.c.bf16 %v2025, %v2024
    %v2118 = vpack.c.bf16 %v2027, %v2026
    %v2119 = vpack.c.bf16 %v2029, %v2028
    %v2120 = vpack.c.bf16 %v2031, %v2030
    %v2121 = vpack.c.bf16 %v2033, %v2032
    %v2122 = vpack.c.bf16 %v2035, %v2034
    %v2123 = vpack.c.bf16 %v2037, %v2036
    %v2124 = vpack.c.bf16 %v2039, %v2038
    %v2125 = vpack.c.bf16 %v2041, %v2040
    %v2126 = vpack.c.bf16 %v2043, %v2042
    %v2127 = vpack.c.bf16 %v2045, %v2044
    %v2128 = vpack.c.bf16 %v2047, %v2046
    %v2129 = vpack.c.bf16 %v2049, %v2048
    %v2130 = vpack.c.bf16 %v2051, %v2050
    %v2131 = vpack.c.bf16 %v2053, %v2052
    %v2132 = vpack.c.bf16 %v2055, %v2054
    %v2133 = vpack.c.bf16 %v2057, %v2056
    %v2134 = vpack.c.bf16 %v2059, %v2058
    %v2135 = vpack.c.bf16 %v2061, %v2060
    %v2136 = vpack.c.bf16 %v2063, %v2062
    %v2137 = vpack.c.bf16 %v2065, %v2064
    %v2138 = vpack.c.bf16 %v2067, %v2066
    %v2139 = vpack.c.bf16 %v2069, %v2068
    %v2140 = vpack.c.bf16 %v2071, %v2070
    %v2141 = vpack.c.bf16 %v2073, %v2072
    %v2142 = vpack.c.bf16 %v2075, %v2074
    %v2143 = vpack.c.bf16 %v2077, %v2076
    %v2144 = vpack.c.bf16 %v2079, %v2078
    %v2145 = vld [vmem:[#allocation2] sm:$0x1]
    %2147 = vset.pattern.permute.xlu0 0
    %2148 = vperm.xlu0 %2147, %v2145
    %v2149 = vpop.permute.xlu0 %2148
    %v2151 = vlaneseq
    %v2152 = vshrl.u32 %v2151, 7
    %v2153 = vsub.s32 0, %v2152
    %v2154 = vrot.slane %v2149, %v2153
    %vm2155 = vcmask 130048
    %v2157 = vsel %vm2155, %v2080, 0
    %v2160 = vsel %vm2155, %v2081, 0
    %v2163 = vsel %vm2155, %v2082, 0
    %v2166 = vsel %vm2155, %v2083, 0
    %v2169 = vsel %vm2155, %v2084, 0
    %v2172 = vsel %vm2155, %v2085, 0
    %v2175 = vsel %vm2155, %v2086, 0
    %v2178 = vsel %vm2155, %v2087, 0
    %v2181 = vsel %vm2155, %v2088, 0
    %v2184 = vsel %vm2155, %v2089, 0
    %v2187 = vsel %vm2155, %v2090, 0
    %v2190 = vsel %vm2155, %v2091, 0
    %v2193 = vsel %vm2155, %v2092, 0
    %v2196 = vsel %vm2155, %v2093, 0
    %v2199 = vsel %vm2155, %v2094, 0
    %v2202 = vsel %vm2155, %v2095, 0
    %v2205 = vsel %vm2155, %v2096, 0
    %v2208 = vsel %vm2155, %v2097, 0
    %v2211 = vsel %vm2155, %v2098, 0
    %v2214 = vsel %vm2155, %v2099, 0
    %v2217 = vsel %vm2155, %v2100, 0
    %v2220 = vsel %vm2155, %v2101, 0
    %v2223 = vsel %vm2155, %v2102, 0
    %v2226 = vsel %vm2155, %v2103, 0
    %v2229 = vsel %vm2155, %v2104, 0
    %v2232 = vsel %vm2155, %v2105, 0
    %v2235 = vsel %vm2155, %v2106, 0
    %v2238 = vsel %vm2155, %v2107, 0
    %v2241 = vsel %vm2155, %v2108, 0
    %v2244 = vsel %vm2155, %v2109, 0
    %v2247 = vsel %vm2155, %v2110, 0
    %v2250 = vsel %vm2155, %v2111, 0
    %v2253 = vsel %vm2155, %v2112, 0
    %v2256 = vsel %vm2155, %v2113, 0
    %v2259 = vsel %vm2155, %v2114, 0
    %v2262 = vsel %vm2155, %v2115, 0
    %v2265 = vsel %vm2155, %v2116, 0
    %v2268 = vsel %vm2155, %v2117, 0
    %v2271 = vsel %vm2155, %v2118, 0
    %v2274 = vsel %vm2155, %v2119, 0
    %v2277 = vsel %vm2155, %v2120, 0
    %v2280 = vsel %vm2155, %v2121, 0
    %v2283 = vsel %vm2155, %v2122, 0
    %v2286 = vsel %vm2155, %v2123, 0
    %v2289 = vsel %vm2155, %v2124, 0
    %v2292 = vsel %vm2155, %v2125, 0
    %v2295 = vsel %vm2155, %v2126, 0
    %v2298 = vsel %vm2155, %v2127, 0
    %v2301 = vsel %vm2155, %v2128, 0
    %v2304 = vsel %vm2155, %v2129, 0
    %v2307 = vsel %vm2155, %v2130, 0
    %v2310 = vsel %vm2155, %v2131, 0
    %v2313 = vsel %vm2155, %v2132, 0
    %v2316 = vsel %vm2155, %v2133, 0
    %v2319 = vsel %vm2155, %v2134, 0
    %v2322 = vsel %vm2155, %v2135, 0
    %v2325 = vsel %vm2155, %v2136, 0
    %v2328 = vsel %vm2155, %v2137, 0
    %v2331 = vsel %vm2155, %v2138, 0
    %v2334 = vsel %vm2155, %v2139, 0
    %v2337 = vsel %vm2155, %v2140, 0
    %v2340 = vsel %vm2155, %v2141, 0
    %v2343 = vsel %vm2155, %v2142, 0
    %v2346 = vsel %vm2155, %v2143, 0
    %v2349 = vsel %vm2155, %v2144, 0
    %2351 = vmatprep.subr.bf16.mxu0 0
    %2352 = vmatpush1.bf16.xpose.msra.mxu0 %v2160
    %2353 = vmatprep.subr.bf16.mxu0 0
    %2354 = vmatpush1.bf16.xpose.msra.mxu0 %v2163
    %2355 = vmatprep.subr.bf16.mxu0 0
    %2356 = vmatpush1.bf16.xpose.msra.mxu0 %v2166
    %2357 = vmatprep.subr.bf16.mxu0 0
    %2358 = vmatpush1.bf16.xpose.msra.mxu0 %v2169
    %2359 = vmatprep.subr.bf16.mxu0 0
    %2360 = vmatpush1.bf16.xpose.msra.mxu0 %v2172
    %2361 = vmatprep.subr.bf16.mxu0 0
    %2362 = vmatpush1.bf16.xpose.msra.mxu0 %v2175
    %2363 = vmatprep.subr.bf16.mxu0 0
    %2364 = vmatpush1.bf16.xpose.msra.mxu0 %v2178
    %2365 = vmatprep.subr.bf16.mxu0 0
    %2366 = vmatpush1.bf16.xpose.msra.mxu0 %v2181
    %2367 = vmatprep.subr.bf16.mxu0 0
    %2368 = vmatpush1.bf16.xpose.msra.mxu0 %v2184
    %2369 = vmatprep.subr.bf16.mxu0 0
    %2370 = vmatpush1.bf16.xpose.msra.mxu0 %v2187
    %2371 = vmatprep.subr.bf16.mxu0 0
    %2372 = vmatpush1.bf16.xpose.msra.mxu0 %v2190
    %2373 = vmatprep.subr.bf16.mxu0 0
    %2374 = vmatpush1.bf16.xpose.msra.mxu0 %v2193
    %2375 = vmatprep.subr.bf16.mxu0 0
    %2376 = vmatpush1.bf16.xpose.msra.mxu0 %v2196
    %2377 = vmatprep.subr.bf16.mxu0 0
    %2378 = vmatpush1.bf16.xpose.msra.mxu0 %v2199
    %2379 = vmatprep.subr.bf16.mxu0 0
    %2380 = vmatpush1.bf16.xpose.msra.mxu0 %v2202
    %2381 = vmatprep.subr.bf16.mxu0 0
    %2382 = vmatpush1.bf16.xpose.msra.mxu0 %v2205
    %2383 = vmatprep.mubr.bf16.mxu0 0
    %2384 = vmatmul.mubr.bf16.gmra.mrb[0].mxu0 %v2157
    %v2385 = vpop.f32.mrb[0].mxu0
    %v2386 = vadd.f32 %v2154, %v2385
    %v2387 = vpop.f32.mrb[0].mxu0
    %v2388 = vadd.f32 %v2154, %v2387
    %v2389 = vpop.f32.mrb[0].mxu0
    %v2390 = vpop.f32.mrb[0].mxu0
    %2391 = vdwg.mxu0
    %2392 = vmatprep.subr.bf16.mxu0 0
    %2393 = vmatpush1.bf16.xpose.msra.mxu0 %v2208
    %2394 = vmatprep.subr.bf16.mxu0 0
    %2395 = vmatpush1.bf16.xpose.msra.mxu0 %v2211
    %2396 = vmatprep.subr.bf16.mxu0 0
    %2397 = vmatpush1.bf16.xpose.msra.mxu0 %v2214
    %2398 = vmatprep.subr.bf16.mxu0 0
    %2399 = vmatpush1.bf16.xpose.msra.mxu0 %v2217
    %2400 = vmatprep.subr.bf16.mxu0 0
    %2401 = vmatpush1.bf16.xpose.msra.mxu0 %v2220
    %2402 = vmatprep.subr.bf16.mxu0 0
    %2403 = vmatpush1.bf16.xpose.msra.mxu0 %v2223
    %2404 = vmatprep.subr.bf16.mxu0 0
    %2405 = vmatpush1.bf16.xpose.msra.mxu0 %v2226
    %2406 = vmatprep.subr.bf16.mxu0 0
    %2407 = vmatpush1.bf16.xpose.msra.mxu0 %v2229
    %2408 = vmatprep.subr.bf16.mxu0 0
    %2409 = vmatpush1.bf16.xpose.msra.mxu0 %v2232
    %2410 = vmatprep.subr.bf16.mxu0 0
    %2411 = vmatpush1.bf16.xpose.msra.mxu0 %v2235
    %2412 = vmatprep.subr.bf16.mxu0 0
    %2413 = vmatpush1.bf16.xpose.msra.mxu0 %v2238
    %2414 = vmatprep.subr.bf16.mxu0 0
    %2415 = vmatpush1.bf16.xpose.msra.mxu0 %v2241
    %2416 = vmatprep.subr.bf16.mxu0 0
    %2417 = vmatpush1.bf16.xpose.msra.mxu0 %v2244
    %2418 = vmatprep.subr.bf16.mxu0 0
    %2419 = vmatpush1.bf16.xpose.msra.mxu0 %v2247
    %2420 = vmatprep.subr.bf16.mxu0 0
    %2421 = vmatpush1.bf16.xpose.msra.mxu0 %v2250
    %2422 = vmatprep.subr.bf16.mxu0 0
    %2423 = vmatpush1.bf16.xpose.msra.mxu0 %v2253
    %2424 = vmatprep.mubr.bf16.mxu0 0
    %2425 = vmatmul.mubr.bf16.gmra.mrb[0].mxu0 %v2157
    %v2426 = vpop.f32.mrb[0].mxu0
    %v2427 = vadd.f32 %v2154, %v2426
    %v2428 = vpop.f32.mrb[0].mxu0
    %v2429 = vadd.f32 %v2154, %v2428
    %v2430 = vpop.f32.mrb[0].mxu0
    %v2431 = vpop.f32.mrb[0].mxu0
    %2432 = vdwg.mxu0
    %2433 = vmatprep.subr.bf16.mxu0 0
    %2434 = vmatpush1.bf16.xpose.msra.mxu0 %v2256
    %2435 = vmatprep.subr.bf16.mxu0 0
    %2436 = vmatpush1.bf16.xpose.msra.mxu0 %v2259
    %2437 = vmatprep.subr.bf16.mxu0 0
    %2438 = vmatpush1.bf16.xpose.msra.mxu0 %v2262
    %2439 = vmatprep.subr.bf16.mxu0 0
    %2440 = vmatpush1.bf16.xpose.msra.mxu0 %v2265
    %2441 = vmatprep.subr.bf16.mxu0 0
    %2442 = vmatpush1.bf16.xpose.msra.mxu0 %v2268
    %2443 = vmatprep.subr.bf16.mxu0 0
    %2444 = vmatpush1.bf16.xpose.msra.mxu0 %v2271
    %2445 = vmatprep.subr.bf16.mxu0 0
    %2446 = vmatpush1.bf16.xpose.msra.mxu0 %v2274
    %2447 = vmatprep.subr.bf16.mxu0 0
    %2448 = vmatpush1.bf16.xpose.msra.mxu0 %v2277
    %2449 = vmatprep.subr.bf16.mxu0 0
    %2450 = vmatpush1.bf16.xpose.msra.mxu0 %v2280
    %2451 = vmatprep.subr.bf16.mxu0 0
    %2452 = vmatpush1.bf16.xpose.msra.mxu0 %v2283
    %2453 = vmatprep.subr.bf16.mxu0 0
    %2454 = vmatpush1.bf16.xpose.msra.mxu0 %v2286
    %2455 = vmatprep.subr.bf16.mxu0 0
    %2456 = vmatpush1.bf16.xpose.msra.mxu0 %v2289
    %2457 = vmatprep.subr.bf16.mxu0 0
    %2458 = vmatpush1.bf16.xpose.msra.mxu0 %v2292
    %2459 = vmatprep.subr.bf16.mxu0 0
    %2460 = vmatpush1.bf16.xpose.msra.mxu0 %v2295
    %2461 = vmatprep.subr.bf16.mxu0 0
    %2462 = vmatpush1.bf16.xpose.msra.mxu0 %v2298
    %2463 = vmatprep.subr.bf16.mxu0 0
    %2464 = vmatpush1.bf16.xpose.msra.mxu0 %v2301
    %2465 = vmatprep.mubr.bf16.mxu0 0
    %2466 = vmatmul.mubr.bf16.gmra.mrb[0].mxu0 %v2157
    %v2467 = vpop.f32.mrb[0].mxu0
    %v2468 = vadd.f32 %v2154, %v2467
    %v2469 = vpop.f32.mrb[0].mxu0
    %v2470 = vadd.f32 %v2154, %v2469
    %v2471 = vpop.f32.mrb[0].mxu0
    %v2472 = vpop.f32.mrb[0].mxu0
    %2473 = vdwg.mxu0
    %2474 = vmatprep.subr.bf16.mxu0 0
    %2475 = vmatpush1.bf16.xpose.msra.mxu0 %v2304
    %2476 = vmatprep.subr.bf16.mxu0 0
    %2477 = vmatpush1.bf16.xpose.msra.mxu0 %v2307
    %2478 = vmatprep.subr.bf16.mxu0 0
    %2479 = vmatpush1.bf16.xpose.msra.mxu0 %v2310
    %2480 = vmatprep.subr.bf16.mxu0 0
    %2481 = vmatpush1.bf16.xpose.msra.mxu0 %v2313
    %2482 = vmatprep.subr.bf16.mxu0 0
    %2483 = vmatpush1.bf16.xpose.msra.mxu0 %v2316
    %2484 = vmatprep.subr.bf16.mxu0 0
    %2485 = vmatpush1.bf16.xpose.msra.mxu0 %v2319
    %2486 = vmatprep.subr.bf16.mxu0 0
    %2487 = vmatpush1.bf16.xpose.msra.mxu0 %v2322
    %2488 = vmatprep.subr.bf16.mxu0 0
    %2489 = vmatpush1.bf16.xpose.msra.mxu0 %v2325
    %2490 = vmatprep.subr.bf16.mxu0 0
    %2491 = vmatpush1.bf16.xpose.msra.mxu0 %v2328
    %2492 = vmatprep.subr.bf16.mxu0 0
    %2493 = vmatpush1.bf16.xpose.msra.mxu0 %v2331
    %2494 = vmatprep.subr.bf16.mxu0 0
    %2495 = vmatpush1.bf16.xpose.msra.mxu0 %v2334
    %2496 = vmatprep.subr.bf16.mxu0 0
    %2497 = vmatpush1.bf16.xpose.msra.mxu0 %v2337
    %2498 = vmatprep.subr.bf16.mxu0 0
    %2499 = vmatpush1.bf16.xpose.msra.mxu0 %v2340
    %2500 = vmatprep.subr.bf16.mxu0 0
    %2501 = vmatpush1.bf16.xpose.msra.mxu0 %v2343
    %2502 = vmatprep.subr.bf16.mxu0 0
    %2503 = vmatpush1.bf16.xpose.msra.mxu0 %v2346
    %2504 = vmatprep.subr.bf16.mxu0 0
    %2505 = vmatpush1.bf16.xpose.msra.mxu0 %v2349
    %2506 = vmatprep.mubr.bf16.mxu0 0
    %2507 = vmatmul.mubr.bf16.gmra.mrb[0].mxu0 %v2157
    %v2508 = vpop.f32.mrb[0].mxu0
    %v2509 = vadd.f32 %v2154, %v2508
    %v2510 = vpop.f32.mrb[0].mxu0
    %v2511 = vadd.f32 %v2154, %v2510
    %v2512 = vpop.f32.mrb[0].mxu0
    %v2513 = vpop.f32.mrb[0].mxu0
    %2514 = vdwg.mxu0
    %v2515 = vsub.f32 0.0, %v2386
    %v2516 = vsub.f32 0.0, %v2388
    %v2517 = vsub.f32 0.0, %v2427
    %v2518 = vsub.f32 0.0, %v2429
    %v2519 = vsub.f32 0.0, %v2468
    %v2520 = vsub.f32 0.0, %v2470
    %v2521 = vsub.f32 0.0, %v2509
    %v2522 = vsub.f32 0.0, %v2511
    %v2523 = vmul.f32 %v2515, 1.442695
    %v2524 = vpow.pop %v2523
    %v2525 = vmul.f32 %v2516, 1.442695
    %v2526 = vpow.pop %v2525
    %v2527 = vmul.f32 %v2517, 1.442695
    %v2528 = vpow.pop %v2527
    %v2529 = vmul.f32 %v2518, 1.442695
    %v2530 = vpow.pop %v2529
    %v2531 = vmul.f32 %v2519, 1.442695
    %v2532 = vpow.pop %v2531
    %v2533 = vmul.f32 %v2520, 1.442695
    %v2534 = vpow.pop %v2533
    %v2535 = vmul.f32 %v2521, 1.442695
    %v2536 = vpow.pop %v2535
    %v2537 = vmul.f32 %v2522, 1.442695
    %v2538 = vpow.pop %v2537
    %v2539 = vadd.f32 %v2524, 1.0
    %v2540 = vadd.f32 %v2526, 1.0
    %v2541 = vadd.f32 %v2528, 1.0
    %v2542 = vadd.f32 %v2530, 1.0
    %v2543 = vadd.f32 %v2532, 1.0
    %v2544 = vadd.f32 %v2534, 1.0
    %v2545 = vadd.f32 %v2536, 1.0
    %v2546 = vadd.f32 %v2538, 1.0
    %v2547 = vrcp.pop %v2539
    %v2548 = vrcp.pop %v2540
    %v2549 = vrcp.pop %v2541
    %v2550 = vrcp.pop %v2542
    %v2551 = vrcp.pop %v2543
    %v2552 = vrcp.pop %v2544
    %v2553 = vrcp.pop %v2545
    %v2554 = vrcp.pop %v2546
    %v2563 = vcombine.low %v2547, %v2548
    %v2564 = vcombine.low %v2549, %v2550
    %v2565 = vcombine.low %v2551, %v2552
    %v2566 = vcombine.low %v2553, %v2554
    %v2568 = vunpack.c.l.s4 1966171168
    %v2569 = vunpack.c.0.s8 %v2568
    %v2570 = vlaneseq
    %v2571 = vshrl.u32 %v2570, 7
    %v2572 = vsub.s32 %v2569, %v2571
    %v2573 = vrot.slane %v2563, %v2572
    %v2575 = vunpack.c.l.s4 1966171168
    %v2576 = vunpack.c.0.s8 %v2575
    %v2577 = vlaneseq
    %v2578 = vshrl.u32 %v2577, 7
    %v2579 = vsub.s32 %v2576, %v2578
    %v2580 = vrot.slane %v2564, %v2579
    %v2582 = vunpack.c.l.s4 1966171168
    %v2583 = vunpack.c.0.s8 %v2582
    %v2584 = vlaneseq
    %v2585 = vshrl.u32 %v2584, 7
    %v2586 = vsub.s32 %v2583, %v2585
    %v2587 = vrot.slane %v2565, %v2586
    %v2589 = vunpack.c.l.s4 1966171168
    %v2590 = vunpack.c.0.s8 %v2589
    %v2591 = vlaneseq
    %v2592 = vshrl.u32 %v2591, 7
    %v2593 = vsub.s32 %v2590, %v2592
    %v2594 = vrot.slane %v2566, %v2593
    %v2595 = vcombine.low %v2573, %v2580
    %v2596 = vcombine.low %v2587, %v2594
    %v2598 = vunpack.c.l.s4 1966171168
    %v2599 = vunpack.c.0.s8 %v2598
    %v2600 = vlaneseq
    %v2601 = vshrl.u32 %v2600, 7
    %v2602 = vsub.s32 %v2599, %v2601
    %v2603 = vrot.slane %v2595, %v2602
    %v2605 = vunpack.c.l.s4 1966171168
    %v2606 = vunpack.c.0.s8 %v2605
    %v2607 = vlaneseq
    %v2608 = vshrl.u32 %v2607, 7
    %v2609 = vsub.s32 %v2606, %v2608
    %v2610 = vrot.slane %v2596, %v2609
    %v2611 = vcombine.low %v2603, %v2610
    %2613 = vst [vmem:[#allocation3] sm:$0xff] %v2611
    // Predicated region
    $region30: #{tpu_custom_call.1} parent=1 // pred_check
      _
    $region31: #{tpu_custom_call.1} parent=1 // pred_check_branch
      %2615 = sbr.rel (0) target = $region33
    $region32: #{tpu_custom_call.1} parent=1 // pred_region
      %s2617 = ssub.s32 128, 128
      %2618 = vsyncadd [#allocation4], %s2617
      %s2620 = sshll.u32 [#allocation3], 4
      %s2621 = int_to_ptr.vmem [resolvable:$true] %s2620
      %2623 = dma.vmem_to_hbm [thread:$0]  %s2621, 128, %s7, [#allocation4]
    $region33: #{tpu_custom_call.1} parent=1 // pred_fallthru
      _
    // Predicated region
    $region34: #{tpu_custom_call.1} parent=1 // pred_check
      _
    $region35: #{tpu_custom_call.1} parent=1 // pred_check_branch
      %2625 = sbr.rel (0) target = $region37
    $region36: #{tpu_custom_call.1} parent=1 // pred_region
      %2626 = dma.done [#allocation4], 128
    $region37: #{tpu_custom_call.1} parent=1 // pred_fallthru
      _
    %2627 = vsyncpa [#allocation4], 1

</llo_original>
